<compile_context>
chip_gen: v7x
topology: tpu7x:2x2x1
jax: 0.10.0
libtpu: 0.0.40
codegen_flags: <defaults>
</compile_context>

<pallas_src>
import functools

import jax
import jax.numpy as jnp
from jax.experimental import pallas as pl
from jax.experimental.pallas import tpu as pltpu

IN_N = 4      # chunked into data_x, data_y, data_z, data_t
M = 32        # hidden width
DEPTH = 3     # number of residual Blocks
OUT_N = 1
BATCH = 512
TB = 2048     # default batch tile (lane axis); multiple of 128. Auto-shrunk in
              # the wrapper so small batches (e.g. the 512-pt demo) are done in
              # one tile; sweep 1K-4K for large collocation batches.
              # On v7x, prefer batches giving an even tile count so the
              # "parallel" grid axis balances across both TensorCores.

# dot_general dims for A @ B^T (contract last dims of both), same pattern as
# the TPU flash-attention q@k^T kernel.
_TRANS_B_DIMS = (((1,), (1,)), ((), ()))


def drrnnt_kernel(x_ref, w0i_ref, b0i_ref, w1t_ref, b1t_ref, w2t_ref, b2t_ref,
                  wft_ref, bft_ref, o_ref):
    # Input layer + in-kernel transpose, fused into one small matmul:
    #   w0i = [W0^T ; I4 ; 0]  (M+8, 4)  ->  z = w0i @ x_tile^T + b0i
    # rows 0..M-1  : h_T = W0^T x^T + b0^T            (M, TB)
    # rows M..M+3  : x^T itself (dx, dy, dz, dt rows)  (lane-dense)
    z = jax.lax.dot_general(
        w0i_ref[...], x_ref[...], _TRANS_B_DIMS,
        preferred_element_type=jnp.float32) + b0i_ref[...]
    h = z[:M, :]                          # (M, TB) f32
    dx = z[M + 0:M + 1, :]                # (1, TB) lane-dense boundary rows
    dy = z[M + 1:M + 2, :]
    dz = z[M + 2:M + 3, :]
    dt = z[M + 3:M + 4, :]

    # residual Blocks: tanh(L2(tanh(L1(h)))) + h, all (M, TB) lane-dense.
    # Weights are pre-packed bf16; activations cast to bf16 at the matmul
    # inputs only, accumulation / residual path stays f32.
    # TODO(synk): on v6e/v7x the two tanh calls could run on bf16 activations
    # (~2x EUP) if a bundle dump shows the EUP slot binding; kept f32 so the
    # same kernel stays accurate on v5e (no bf16 EUP/VPU).
    for d in range(DEPTH):                # static unroll, DEPTH is small
        t1 = jnp.tanh(
            jnp.dot(w1t_ref[d], h.astype(jnp.bfloat16),
                    preferred_element_type=jnp.float32) + b1t_ref[d])
        t2 = jnp.tanh(
            jnp.dot(w2t_ref[d], t1.astype(jnp.bfloat16),
                    preferred_element_type=jnp.float32) + b2t_ref[d])
        h = t2 + h

    # output layer: (OUT_N, M) @ (M, TB) -> (1, TB), lane-dense. Kept f32
    # (MXU slack; rewriting as VPU FMA only worthwhile if MXU-push bound).
    y = jnp.dot(wft_ref[...], h, preferred_element_type=jnp.float32) + bft_ref[...]

    # boundary factor folded into one dense-row product, then fused into y.
    f = dx * dy * dz * dt * (1.0 - dx) * (1.0 - dy) * (1.0 - dz)
    o_ref[...] = y * f + 1.0


@functools.partial(jax.jit, static_argnames=("tb",))
def drrnnt_forward(x, packed_params, tb=TB):
    """x: (batch, IN_N) row-major, same as the PyTorch module's input."""
    w0i, b0i, w1ts, b1ts, w2ts, b2ts, wft, bft = packed_params
    b = x.shape[0]

    # Shrink the tile so small batches run in a single grid step (per-step
    # overhead ~0.35us dominates otherwise); keep a multiple of 128.
    tb = min(tb, max(128, pl.next_power_of_2(b)))
    n_tiles = pl.cdiv(b, tb)              # remainder-safe grid; tail block
                                          # reads are garbage (discarded),
                                          # tail writes are masked by Pallas.

    # Grid-invariant weights/biases: constant index_map -> DMA'd once and kept
    # resident in VMEM across the batch grid (total ~20 KiB, negligible).
    def full(a):
        shape = a.shape
        return pl.BlockSpec(shape, lambda i: (0,) * len(shape))

    out_t = pl.pallas_call(
        drrnnt_kernel,
        out_shape=jax.ShapeDtypeStruct((1, b), jnp.float32),
        grid_spec=pltpu.PrefetchScalarGridSpec(
            num_scalar_prefetch=0,
            grid=(n_tiles,),
            in_specs=[
                pl.BlockSpec((tb, IN_N), lambda i: (i, 0)),   # row-major x tile
                full(w0i), full(b0i),                         # fused input layer + I4
                full(w1ts), full(b1ts),                       # block L1 (stacked, bf16)
                full(w2ts), full(b2ts),                       # block L2 (stacked, bf16)
                full(wft), full(bft),                         # output layer
            ],
            out_specs=pl.BlockSpec((1, tb), lambda i: (0, i)),  # lane-dense slab
        ),
        compiler_params=pltpu.CompilerParams(
            dimension_semantics=("parallel",),       # shard batch tiles across TCs (v7x)
            vmem_limit_bytes=32 * 1024 * 1024,       # ample: <1 MiB live even at tb=4K
        ),
    )(x, w0i, b0i, w1ts, b1ts, w2ts, b2ts, wft, bft)

    return out_t.T                        # (b, OUT_N)


def init_params(key):
    """Deterministic synthetic parameters in PyTorch nn.Linear layout (in, out)."""
    ks = jax.random.split(key, 8)
    scale = 0.3
    w0 = scale * jax.random.normal(ks[0], (IN_N, M), jnp.float32)
    b0 = scale * jax.random.normal(ks[1], (1, M), jnp.float32)
    w1s = scale * jax.random.normal(ks[2], (DEPTH, M, M), jnp.float32)
    b1s = scale * jax.random.normal(ks[3], (DEPTH, 1, M), jnp.float32)
    w2s = scale * jax.random.normal(ks[4], (DEPTH, M, M), jnp.float32)
    b2s = scale * jax.random.normal(ks[5], (DEPTH, 1, M), jnp.float32)
    wf = scale * jax.random.normal(ks[6], (M, OUT_N), jnp.float32)
    bf = scale * jax.random.normal(ks[7], (1, OUT_N), jnp.float32)
    return (w0, b0, w1s, b1s, w2s, b2s, wf, bf)


def pack_params(params):
    """Pre-pack params once into the kernel's (out, in) layout.

    - Input layer: concat [W0^T ; I4 ; 0] so one matmul yields both h_T and
      the transposed dx/dy/dz/dt rows (rows padded to a multiple of 8).
    - Residual-block weights pre-cast to bf16 (MXU-native); biases stay f32.
    """
    w0, b0, w1s, b1s, w2s, b2s, wf, bf = params
    w0i = jnp.concatenate(
        [w0.T, jnp.eye(IN_N, dtype=jnp.float32),
         jnp.zeros((4, IN_N), jnp.float32)], axis=0)            # (M+8, IN_N)
    b0i = jnp.concatenate(
        [b0.T, jnp.zeros((8, 1), jnp.float32)], axis=0)         # (M+8, 1)
    return (w0i, b0i,
            jnp.swapaxes(w1s, -1, -2).astype(jnp.bfloat16),
            jnp.swapaxes(b1s, -1, -2),
            jnp.swapaxes(w2s, -1, -2).astype(jnp.bfloat16),
            jnp.swapaxes(b2s, -1, -2),
            wf.T, bf.T)


def drrnnt_reference(x, params):
    """Pure-JAX reference mirroring the PyTorch forward (f32, row-major)."""
    w0, b0, w1s, b1s, w2s, b2s, wf, bf = params
    dx, dy, dz, dt = jnp.split(x, 4, axis=1)
    h = x @ w0 + b0
    for d in range(DEPTH):
        h = jnp.tanh(jnp.tanh(h @ w1s[d] + b1s[d]) @ w2s[d] + b2s[d]) + h
    y = h @ wf + bf
    return y * dx * dy * dz * dt * (1 - dx) * (1 - dy) * (1 - dz) + 1.0


if __name__ == "__main__":
    key = jax.random.PRNGKey(0)
    kx, kp = jax.random.split(key)
    params = init_params(kp)
    packed = pack_params(params)

    # inputs in [0,1] like collocation points for a PDE on the unit hypercube
    x = jax.random.uniform(kx, (BATCH, IN_N), jnp.float32)
    out = jax.block_until_ready(drrnnt_forward(x, packed))
    ref = drrnnt_reference(x, params)
    assert out.shape == (BATCH, OUT_N)
    # tolerance loosened vs pure-f32 because residual-block matmuls run in bf16
    assert jnp.allclose(out, ref, atol=1e-2, rtol=1e-2), "mismatch vs reference"

    # ragged batch (not a multiple of the tile) exercises the masked-tail path
    xr = jax.random.uniform(kx, (300, IN_N), jnp.float32)
    out_r = jax.block_until_ready(drrnnt_forward(xr, packed))
    ref_r = drrnnt_reference(xr, params)
    assert out_r.shape == (300, OUT_N)
    assert jnp.allclose(out_r, ref_r, atol=1e-2, rtol=1e-2), "mismatch vs reference (ragged)"

    print("KERNEL_OK")
</pallas_src>

<mosaic_0001>
module attributes {stable_mosaic.version = 11 : i64} {
  func.func @drrnnt_kernel(%arg0: i32, %arg1: memref<512x4xf32, #tpu.memory_space<vmem>>, %arg2: memref<40x4xf32, #tpu.memory_space<vmem>>, %arg3: memref<40x1xf32, #tpu.memory_space<vmem>>, %arg4: memref<3x32x32xbf16, #tpu.memory_space<vmem>>, %arg5: memref<3x32x1xf32, #tpu.memory_space<vmem>>, %arg6: memref<3x32x32xbf16, #tpu.memory_space<vmem>>, %arg7: memref<3x32x1xf32, #tpu.memory_space<vmem>>, %arg8: memref<1x32xf32, #tpu.memory_space<vmem>>, %arg9: memref<1x1xf32, #tpu.memory_space<vmem>>, %arg10: memref<1x512xf32, #tpu.memory_space<vmem>>) attributes {dimension_semantics = [#tpu.dimension_semantics<parallel>], iteration_bounds = array<i64: 1>, scalar_prefetch = 0 : i64, scratch_operands = 0 : i64, tpu.core_type = #tpu.core_type<tc>, window_params = [{transform_indices = @transform_0, window_bounds = array<i64: 512, 4>}, {pipeline_mode = #tpu.pipeline_mode<synchronous>, transform_indices = @transform_1, window_bounds = array<i64: 40, 4>}, {pipeline_mode = #tpu.pipeline_mode<synchronous>, transform_indices = @transform_2, window_bounds = array<i64: 40, 1>}, {pipeline_mode = #tpu.pipeline_mode<synchronous>, transform_indices = @transform_3, window_bounds = array<i64: 3, 32, 32>}, {pipeline_mode = #tpu.pipeline_mode<synchronous>, transform_indices = @transform_4, window_bounds = array<i64: 3, 32, 1>}, {pipeline_mode = #tpu.pipeline_mode<synchronous>, transform_indices = @transform_5, window_bounds = array<i64: 3, 32, 32>}, {pipeline_mode = #tpu.pipeline_mode<synchronous>, transform_indices = @transform_6, window_bounds = array<i64: 3, 32, 1>}, {pipeline_mode = #tpu.pipeline_mode<synchronous>, transform_indices = @transform_7, window_bounds = array<i64: 1, 32>}, {pipeline_mode = #tpu.pipeline_mode<synchronous>, transform_indices = @transform_8, window_bounds = array<i64: 1, 1>}, {transform_indices = @transform_9, window_bounds = array<i64: 1, 512>}]} {
    %c0 = arith.constant 0 : index
    %c0_0 = arith.constant 0 : index
    %0 = vector.load %arg2[%c0, %c0_0] : memref<40x4xf32, #tpu.memory_space<vmem>>, vector<40x4xf32>
    %c0_1 = arith.constant 0 : index
    %c0_2 = arith.constant 0 : index
    %1 = vector.load %arg1[%c0_1, %c0_2] : memref<512x4xf32, #tpu.memory_space<vmem>>, vector<512x4xf32>
    %cst = arith.constant dense<0.000000e+00> : vector<40x512xf32>
    %2 = tpu.matmul %0, %1, %cst {dimension_numbers = #tpu.dot_dimension_numbers<[1], [1], [0], [0], [0, 0, 1, 0], [], []>} : vector<40x4xf32>, vector<512x4xf32>, vector<40x512xf32> -> vector<40x512xf32>
    %c0_3 = arith.constant 0 : index
    %c0_4 = arith.constant 0 : index
    %3 = vector.load %arg3[%c0_3, %c0_4] : memref<40x1xf32, #tpu.memory_space<vmem>>, vector<40x1xf32>
    %4 = vector.broadcast %3 : vector<40x1xf32> to vector<40x512xf32>
    %5 = arith.addf %2, %4 : vector<40x512xf32>
    %6 = vector.extract_strided_slice %5 {offsets = [0, 0], sizes = [32, 512], strides = [1, 1]} : vector<40x512xf32> to vector<32x512xf32>
    %7 = vector.extract_strided_slice %5 {offsets = [32, 0], sizes = [1, 512], strides = [1, 1]} : vector<40x512xf32> to vector<1x512xf32>
    %8 = vector.extract_strided_slice %5 {offsets = [33, 0], sizes = [1, 512], strides = [1, 1]} : vector<40x512xf32> to vector<1x512xf32>
    %9 = vector.extract_strided_slice %5 {offsets = [34, 0], sizes = [1, 512], strides = [1, 1]} : vector<40x512xf32> to vector<1x512xf32>
    %10 = vector.extract_strided_slice %5 {offsets = [35, 0], sizes = [1, 512], strides = [1, 1]} : vector<40x512xf32> to vector<1x512xf32>
    %c0_5 = arith.constant 0 : index
    %c0_6 = arith.constant 0 : index
    %c0_7 = arith.constant 0 : index
    %11 = vector.load %arg4[%c0_5, %c0_6, %c0_7] : memref<3x32x32xbf16, #tpu.memory_space<vmem>>, vector<1x32x32xbf16>
    %12 = vector.shape_cast %11 : vector<1x32x32xbf16> to vector<32x32xbf16>
    %13 = arith.truncf %6 : vector<32x512xf32> to vector<32x512xbf16>
    %cst_8 = arith.constant dense<0.000000e+00> : vector<32x512xf32>
    %14 = tpu.matmul %12, %13, %cst_8 {dimension_numbers = #tpu.dot_dimension_numbers<[1], [0], [0], [1], [0, 0, 1, 1], [], []>} : vector<32x32xbf16>, vector<32x512xbf16>, vector<32x512xf32> -> vector<32x512xf32>
    %c0_9 = arith.constant 0 : index
    %c0_10 = arith.constant 0 : index
    %c0_11 = arith.constant 0 : index
    %15 = vector.load %arg5[%c0_9, %c0_10, %c0_11] : memref<3x32x1xf32, #tpu.memory_space<vmem>>, vector<1x32x1xf32>
    %16 = vector.shape_cast %15 : vector<1x32x1xf32> to vector<32x1xf32>
    %17 = vector.broadcast %16 : vector<32x1xf32> to vector<32x512xf32>
    %18 = arith.addf %14, %17 : vector<32x512xf32>
    %19 = math.tanh %18 : vector<32x512xf32>
    %c0_12 = arith.constant 0 : index
    %c0_13 = arith.constant 0 : index
    %c0_14 = arith.constant 0 : index
    %20 = vector.load %arg6[%c0_12, %c0_13, %c0_14] : memref<3x32x32xbf16, #tpu.memory_space<vmem>>, vector<1x32x32xbf16>
    %21 = vector.shape_cast %20 : vector<1x32x32xbf16> to vector<32x32xbf16>
    %22 = arith.truncf %19 : vector<32x512xf32> to vector<32x512xbf16>
    %cst_15 = arith.constant dense<0.000000e+00> : vector<32x512xf32>
    %23 = tpu.matmul %21, %22, %cst_15 {dimension_numbers = #tpu.dot_dimension_numbers<[1], [0], [0], [1], [0, 0, 1, 1], [], []>} : vector<32x32xbf16>, vector<32x512xbf16>, vector<32x512xf32> -> vector<32x512xf32>
    %c0_16 = arith.constant 0 : index
    %c0_17 = arith.constant 0 : index
    %c0_18 = arith.constant 0 : index
    %24 = vector.load %arg7[%c0_16, %c0_17, %c0_18] : memref<3x32x1xf32, #tpu.memory_space<vmem>>, vector<1x32x1xf32>
    %25 = vector.shape_cast %24 : vector<1x32x1xf32> to vector<32x1xf32>
    %26 = vector.broadcast %25 : vector<32x1xf32> to vector<32x512xf32>
    %27 = arith.addf %23, %26 : vector<32x512xf32>
    %28 = math.tanh %27 : vector<32x512xf32>
    %29 = arith.addf %28, %6 : vector<32x512xf32>
    %c1 = arith.constant 1 : index
    %c0_19 = arith.constant 0 : index
    %c0_20 = arith.constant 0 : index
    %30 = vector.load %arg4[%c1, %c0_19, %c0_20] : memref<3x32x32xbf16, #tpu.memory_space<vmem>>, vector<1x32x32xbf16>
    %31 = vector.shape_cast %30 : vector<1x32x32xbf16> to vector<32x32xbf16>
    %32 = arith.truncf %29 : vector<32x512xf32> to vector<32x512xbf16>
    %cst_21 = arith.constant dense<0.000000e+00> : vector<32x512xf32>
    %33 = tpu.matmul %31, %32, %cst_21 {dimension_numbers = #tpu.dot_dimension_numbers<[1], [0], [0], [1], [0, 0, 1, 1], [], []>} : vector<32x32xbf16>, vector<32x512xbf16>, vector<32x512xf32> -> vector<32x512xf32>
    %c1_22 = arith.constant 1 : index
    %c0_23 = arith.constant 0 : index
    %c0_24 = arith.constant 0 : index
    %34 = vector.load %arg5[%c1_22, %c0_23, %c0_24] : memref<3x32x1xf32, #tpu.memory_space<vmem>>, vector<1x32x1xf32>
    %35 = vector.shape_cast %34 : vector<1x32x1xf32> to vector<32x1xf32>
    %36 = vector.broadcast %35 : vector<32x1xf32> to vector<32x512xf32>
    %37 = arith.addf %33, %36 : vector<32x512xf32>
    %38 = math.tanh %37 : vector<32x512xf32>
    %c1_25 = arith.constant 1 : index
    %c0_26 = arith.constant 0 : index
    %c0_27 = arith.constant 0 : index
    %39 = vector.load %arg6[%c1_25, %c0_26, %c0_27] : memref<3x32x32xbf16, #tpu.memory_space<vmem>>, vector<1x32x32xbf16>
    %40 = vector.shape_cast %39 : vector<1x32x32xbf16> to vector<32x32xbf16>
    %41 = arith.truncf %38 : vector<32x512xf32> to vector<32x512xbf16>
    %cst_28 = arith.constant dense<0.000000e+00> : vector<32x512xf32>
    %42 = tpu.matmul %40, %41, %cst_28 {dimension_numbers = #tpu.dot_dimension_numbers<[1], [0], [0], [1], [0, 0, 1, 1], [], []>} : vector<32x32xbf16>, vector<32x512xbf16>, vector<32x512xf32> -> vector<32x512xf32>
    %c1_29 = arith.constant 1 : index
    %c0_30 = arith.constant 0 : index
    %c0_31 = arith.constant 0 : index
    %43 = vector.load %arg7[%c1_29, %c0_30, %c0_31] : memref<3x32x1xf32, #tpu.memory_space<vmem>>, vector<1x32x1xf32>
    %44 = vector.shape_cast %43 : vector<1x32x1xf32> to vector<32x1xf32>
    %45 = vector.broadcast %44 : vector<32x1xf32> to vector<32x512xf32>
    %46 = arith.addf %42, %45 : vector<32x512xf32>
    %47 = math.tanh %46 : vector<32x512xf32>
    %48 = arith.addf %47, %29 : vector<32x512xf32>
    %c2 = arith.constant 2 : index
    %c0_32 = arith.constant 0 : index
    %c0_33 = arith.constant 0 : index
    %49 = vector.load %arg4[%c2, %c0_32, %c0_33] : memref<3x32x32xbf16, #tpu.memory_space<vmem>>, vector<1x32x32xbf16>
    %50 = vector.shape_cast %49 : vector<1x32x32xbf16> to vector<32x32xbf16>
    %51 = arith.truncf %48 : vector<32x512xf32> to vector<32x512xbf16>
    %cst_34 = arith.constant dense<0.000000e+00> : vector<32x512xf32>
    %52 = tpu.matmul %50, %51, %cst_34 {dimension_numbers = #tpu.dot_dimension_numbers<[1], [0], [0], [1], [0, 0, 1, 1], [], []>} : vector<32x32xbf16>, vector<32x512xbf16>, vector<32x512xf32> -> vector<32x512xf32>
    %c2_35 = arith.constant 2 : index
    %c0_36 = arith.constant 0 : index
    %c0_37 = arith.constant 0 : index
    %53 = vector.load %arg5[%c2_35, %c0_36, %c0_37] : memref<3x32x1xf32, #tpu.memory_space<vmem>>, vector<1x32x1xf32>
    %54 = vector.shape_cast %53 : vector<1x32x1xf32> to vector<32x1xf32>
    %55 = vector.broadcast %54 : vector<32x1xf32> to vector<32x512xf32>
    %56 = arith.addf %52, %55 : vector<32x512xf32>
    %57 = math.tanh %56 : vector<32x512xf32>
    %c2_38 = arith.constant 2 : index
    %c0_39 = arith.constant 0 : index
    %c0_40 = arith.constant 0 : index
    %58 = vector.load %arg6[%c2_38, %c0_39, %c0_40] : memref<3x32x32xbf16, #tpu.memory_space<vmem>>, vector<1x32x32xbf16>
    %59 = vector.shape_cast %58 : vector<1x32x32xbf16> to vector<32x32xbf16>
    %60 = arith.truncf %57 : vector<32x512xf32> to vector<32x512xbf16>
    %cst_41 = arith.constant dense<0.000000e+00> : vector<32x512xf32>
    %61 = tpu.matmul %59, %60, %cst_41 {dimension_numbers = #tpu.dot_dimension_numbers<[1], [0], [0], [1], [0, 0, 1, 1], [], []>} : vector<32x32xbf16>, vector<32x512xbf16>, vector<32x512xf32> -> vector<32x512xf32>
    %c2_42 = arith.constant 2 : index
    %c0_43 = arith.constant 0 : index
    %c0_44 = arith.constant 0 : index
    %62 = vector.load %arg7[%c2_42, %c0_43, %c0_44] : memref<3x32x1xf32, #tpu.memory_space<vmem>>, vector<1x32x1xf32>
    %63 = vector.shape_cast %62 : vector<1x32x1xf32> to vector<32x1xf32>
    %64 = vector.broadcast %63 : vector<32x1xf32> to vector<32x512xf32>
    %65 = arith.addf %61, %64 : vector<32x512xf32>
    %66 = math.tanh %65 : vector<32x512xf32>
    %67 = arith.addf %66, %48 : vector<32x512xf32>
    %c0_45 = arith.constant 0 : index
    %c0_46 = arith.constant 0 : index
    %68 = vector.load %arg8[%c0_45, %c0_46] : memref<1x32xf32, #tpu.memory_space<vmem>>, vector<1x32xf32>
    %cst_47 = arith.constant dense<0.000000e+00> : vector<1x512xf32>
    %69 = tpu.matmul %68, %67, %cst_47 {dimension_numbers = #tpu.dot_dimension_numbers<[1], [0], [0], [1], [0, 0, 1, 1], [], []>} : vector<1x32xf32>, vector<32x512xf32>, vector<1x512xf32> -> vector<1x512xf32>
    %c0_48 = arith.constant 0 : index
    %c0_49 = arith.constant 0 : index
    %70 = vector.load %arg9[%c0_48, %c0_49] : memref<1x1xf32, #tpu.memory_space<vmem>>, vector<1x1xf32>
    %71 = vector.broadcast %70 : vector<1x1xf32> to vector<1x512xf32>
    %72 = arith.addf %69, %71 : vector<1x512xf32>
    %73 = arith.mulf %7, %8 : vector<1x512xf32>
    %74 = arith.mulf %73, %9 : vector<1x512xf32>
    %75 = arith.mulf %74, %10 : vector<1x512xf32>
    %cst_50 = arith.constant 1.000000e+00 : f32
    %76 = vector.broadcast %cst_50 : f32 to vector<1x512xf32>
    %77 = arith.subf %76, %7 : vector<1x512xf32>
    %78 = arith.mulf %75, %77 : vector<1x512xf32>
    %cst_51 = arith.constant 1.000000e+00 : f32
    %79 = vector.broadcast %cst_51 : f32 to vector<1x512xf32>
    %80 = arith.subf %79, %8 : vector<1x512xf32>
    %81 = arith.mulf %78, %80 : vector<1x512xf32>
    %cst_52 = arith.constant 1.000000e+00 : f32
    %82 = vector.broadcast %cst_52 : f32 to vector<1x512xf32>
    %83 = arith.subf %82, %9 : vector<1x512xf32>
    %84 = arith.mulf %81, %83 : vector<1x512xf32>
    %85 = arith.mulf %72, %84 : vector<1x512xf32>
    %cst_53 = arith.constant 1.000000e+00 : f32
    %86 = vector.broadcast %cst_53 : f32 to vector<1x512xf32>
    %87 = arith.addf %85, %86 : vector<1x512xf32>
    %c0_54 = arith.constant 0 : index
    %c0_55 = arith.constant 0 : index
    %88 = vector.load %arg10[%c0_54, %c0_55] : memref<1x512xf32, #tpu.memory_space<vmem>>, vector<1x512xf32>
    tpu.vector_store %arg10[%c0_54, %c0_55], %87 {strides = array<i32>} : memref<1x512xf32, #tpu.memory_space<vmem>>, vector<1x512xf32>,
    return
  }
  func.func @transform_0(%arg0: i32) -> (i32, i32) {
    %c0_i32 = arith.constant 0 : i32
    %c0_i32_0 = arith.constant 0 : i32
    return %arg0, %c0_i32 : i32, i32
  }
  func.func @transform_1(%arg0: i32) -> (i32, i32) {
    %c0_i32 = arith.constant 0 : i32
    %c0_i32_0 = arith.constant 0 : i32
    %c0_i32_1 = arith.constant 0 : i32
    return %c0_i32, %c0_i32_0 : i32, i32
  }
  func.func @transform_2(%arg0: i32) -> (i32, i32) {
    %c0_i32 = arith.constant 0 : i32
    %c0_i32_0 = arith.constant 0 : i32
    %c0_i32_1 = arith.constant 0 : i32
    return %c0_i32, %c0_i32_0 : i32, i32
  }
  func.func @transform_3(%arg0: i32) -> (i32, i32, i32) {
    %c0_i32 = arith.constant 0 : i32
    %c0_i32_0 = arith.constant 0 : i32
    %c0_i32_1 = arith.constant 0 : i32
    %c0_i32_2 = arith.constant 0 : i32
    return %c0_i32, %c0_i32_0, %c0_i32_1 : i32, i32, i32
  }
  func.func @transform_4(%arg0: i32) -> (i32, i32, i32) {
    %c0_i32 = arith.constant 0 : i32
    %c0_i32_0 = arith.constant 0 : i32
    %c0_i32_1 = arith.constant 0 : i32
    %c0_i32_2 = arith.constant 0 : i32
    return %c0_i32, %c0_i32_0, %c0_i32_1 : i32, i32, i32
  }
  func.func @transform_5(%arg0: i32) -> (i32, i32, i32) {
    %c0_i32 = arith.constant 0 : i32
    %c0_i32_0 = arith.constant 0 : i32
    %c0_i32_1 = arith.constant 0 : i32
    %c0_i32_2 = arith.constant 0 : i32
    return %c0_i32, %c0_i32_0, %c0_i32_1 : i32, i32, i32
  }
  func.func @transform_6(%arg0: i32) -> (i32, i32, i32) {
    %c0_i32 = arith.constant 0 : i32
    %c0_i32_0 = arith.constant 0 : i32
    %c0_i32_1 = arith.constant 0 : i32
    %c0_i32_2 = arith.constant 0 : i32
    return %c0_i32, %c0_i32_0, %c0_i32_1 : i32, i32, i32
  }
  func.func @transform_7(%arg0: i32) -> (i32, i32) {
    %c0_i32 = arith.constant 0 : i32
    %c0_i32_0 = arith.constant 0 : i32
    %c0_i32_1 = arith.constant 0 : i32
    return %c0_i32, %c0_i32_0 : i32, i32
  }
  func.func @transform_8(%arg0: i32) -> (i32, i32) {
    %c0_i32 = arith.constant 0 : i32
    %c0_i32_0 = arith.constant 0 : i32
    %c0_i32_1 = arith.constant 0 : i32
    return %c0_i32, %c0_i32_0 : i32, i32
  }
  func.func @transform_9(%arg0: i32) -> (i32, i32) {
    %c0_i32 = arith.constant 0 : i32
    %c0_i32_0 = arith.constant 0 : i32
    return %c0_i32, %arg0 : i32, i32
  }
}

</mosaic_0001>

<llo_original>
// kernel: drrnnt_forward.1
$region0: #{drrnnt_forward.1}
  #allocation0 [shape = 'u32[]', space=smem, size = 0x4, offset = 0x4, fixed_abs, tag = 'smem constant byte address 0x4 - core index']
  #allocation1 [shape = 'u32[144,128]{1,0:T(1,128)}', space=vmem, size = 0x12000, scoped, tag = 'internal scratch']
  #allocation2 [shape = 'f32[1,1]{1,0:T(1,128)S(1)}', space=vmem, size = 0x200, scoped, tag = 'scoped memory for drrnnt_forward.1']
  %s0 = inlined_call_operand.vmem [shape: f32[512,4], index: 0, kind: input, shape index: {}]
  %s1 = inlined_call_operand.vmem [shape: f32[40,4], index: 1, kind: input, shape index: {}]
  %s2 = inlined_call_operand.vmem [shape: f32[40,1], index: 2, kind: input, shape index: {}]
  %s3 = inlined_call_operand.vmem [shape: bf16[3,32,32], index: 3, kind: input, shape index: {}]
  %s4 = inlined_call_operand.vmem [shape: f32[3,32,1], index: 4, kind: input, shape index: {}]
  %s5 = inlined_call_operand.vmem [shape: bf16[3,32,32], index: 5, kind: input, shape index: {}]
  %s6 = inlined_call_operand.vmem [shape: f32[3,32,1], index: 6, kind: input, shape index: {}]
  %s7 = inlined_call_operand.vmem [shape: f32[1,32], index: 7, kind: input, shape index: {}]
  %s8 = inlined_call_operand.<no memory space> [shape: f32[1,1], index: 8, kind: input, shape index: {}]
  %s9 = inlined_call_operand.hbm [shape: f32[1,512], index: 9, kind: output, shape index: {}]
  %s10 = sld [smem:[#allocation0]]
  $region46: #{drrnnt_forward.1} parent=0
    _
  %s12 = ssub.s32 1, %s10
  %s13 = scalar_select 0, %s12, %s10
  %v14 = vstv %s8
  %15 = vst [vmem:[#allocation2] sm:$0x1] %v14
  $region1: #{drrnnt_forward.1} parent=0
    #allocation3 [shape = 'u8[2048]{0}', space=vmem, size = 0x800, scoped, tag = 'output window, operand 0, single buffered']
    #allocation4 [shape = 's32[1]{0}', space=sflag, size = 0x4, scoped, tag = 'scoped memory for drrnnt_forward.1']
    %16 = vsyncpa [#allocation4], 0
    // Predicated region
    $region2: #{drrnnt_forward.1} parent=1 // pred_check
      _
    $region3: #{drrnnt_forward.1} parent=1 // pred_check_branch
      %18 = sbr.rel (0) target = $region5
    $region4: #{drrnnt_forward.1} parent=1 // pred_region
      _
    $region5: #{drrnnt_forward.1} parent=1 // pred_fallthru
      _
    // Predicated region
    $region6: #{drrnnt_forward.1} parent=1 // pred_check
      _
    $region7: #{drrnnt_forward.1} parent=1 // pred_check_branch
      %20 = sbr.rel (0) target = $region9
    $region8: #{drrnnt_forward.1} parent=1 // pred_region
      _
    $region9: #{drrnnt_forward.1} parent=1 // pred_fallthru
      _
    // Predicated region
    $region10: #{drrnnt_forward.1} parent=1 // pred_check
      _
    $region11: #{drrnnt_forward.1} parent=1 // pred_check_branch
      %22 = sbr.rel (0) target = $region13
    $region12: #{drrnnt_forward.1} parent=1 // pred_region
      _
    $region13: #{drrnnt_forward.1} parent=1 // pred_fallthru
      _
    // Predicated region
    $region14: #{drrnnt_forward.1} parent=1 // pred_check
      _
    $region15: #{drrnnt_forward.1} parent=1 // pred_check_branch
      %24 = sbr.rel (0) target = $region17
    $region16: #{drrnnt_forward.1} parent=1 // pred_region
      _
    $region17: #{drrnnt_forward.1} parent=1 // pred_fallthru
      _
    // Predicated region
    $region18: #{drrnnt_forward.1} parent=1 // pred_check
      _
    $region19: #{drrnnt_forward.1} parent=1 // pred_check_branch
      %26 = sbr.rel (0) target = $region21
    $region20: #{drrnnt_forward.1} parent=1 // pred_region
      _
    $region21: #{drrnnt_forward.1} parent=1 // pred_fallthru
      _
    // Predicated region
    $region22: #{drrnnt_forward.1} parent=1 // pred_check
      _
    $region23: #{drrnnt_forward.1} parent=1 // pred_check_branch
      %28 = sbr.rel (0) target = $region25
    $region24: #{drrnnt_forward.1} parent=1 // pred_region
      _
    $region25: #{drrnnt_forward.1} parent=1 // pred_fallthru
      _
    // Predicated region
    $region26: #{drrnnt_forward.1} parent=1 // pred_check
      _
    $region27: #{drrnnt_forward.1} parent=1 // pred_check_branch
      %30 = sbr.rel (0) target = $region29
    $region28: #{drrnnt_forward.1} parent=1 // pred_region
      _
    $region29: #{drrnnt_forward.1} parent=1 // pred_fallthru
      _
    // Predicated region
    $region30: #{drrnnt_forward.1} parent=1 // pred_check
      _
    $region31: #{drrnnt_forward.1} parent=1 // pred_check_branch
      %32 = sbr.rel (0) target = $region33
    $region32: #{drrnnt_forward.1} parent=1 // pred_region
      _
    $region33: #{drrnnt_forward.1} parent=1 // pred_fallthru
      _
    // Predicated region
    $region34: #{drrnnt_forward.1} parent=1 // pred_check
      _
    $region35: #{drrnnt_forward.1} parent=1 // pred_check_branch
      %34 = sbr.rel (0) target = $region37
    $region36: #{drrnnt_forward.1} parent=1 // pred_region
      _
    $region37: #{drrnnt_forward.1} parent=1 // pred_fallthru
      _
    %v36 = vld [vmem:[%s1] sm:$0xff]
    %v37 = vld [vmem:[%s1 + $0x8] sm:$0xff]
    %v38 = vld [vmem:[%s1 + $0x10] sm:$0xff]
    %v39 = vld [vmem:[%s1 + $0x18] sm:$0xff]
    %v40 = vld [vmem:[%s1 + $0x20] sm:$0xff]
    %v41 = vld [vmem:[%s0] sm:$0xff]
    %v42 = vld [vmem:[%s0 + $0x8] sm:$0xff]
    %v43 = vld [vmem:[%s0 + $0x10] sm:$0xff]
    %v44 = vld [vmem:[%s0 + $0x18] sm:$0xff]
    %v45 = vld [vmem:[%s0 + $0x20] sm:$0xff]
    %v46 = vld [vmem:[%s0 + $0x28] sm:$0xff]
    %v47 = vld [vmem:[%s0 + $0x30] sm:$0xff]
    %v48 = vld [vmem:[%s0 + $0x38] sm:$0xff]
    %v49 = vld [vmem:[%s0 + $0x40] sm:$0xff]
    %v50 = vld [vmem:[%s0 + $0x48] sm:$0xff]
    %v51 = vld [vmem:[%s0 + $0x50] sm:$0xff]
    %v52 = vld [vmem:[%s0 + $0x58] sm:$0xff]
    %v53 = vld [vmem:[%s0 + $0x60] sm:$0xff]
    %v54 = vld [vmem:[%s0 + $0x68] sm:$0xff]
    %v55 = vld [vmem:[%s0 + $0x70] sm:$0xff]
    %v56 = vld [vmem:[%s0 + $0x78] sm:$0xff]
    %v57 = vld [vmem:[%s0 + $0x80] sm:$0xff]
    %v58 = vld [vmem:[%s0 + $0x88] sm:$0xff]
    %v59 = vld [vmem:[%s0 + $0x90] sm:$0xff]
    %v60 = vld [vmem:[%s0 + $0x98] sm:$0xff]
    %v61 = vld [vmem:[%s0 + $0xa0] sm:$0xff]
    %v62 = vld [vmem:[%s0 + $0xa8] sm:$0xff]
    %v63 = vld [vmem:[%s0 + $0xb0] sm:$0xff]
    %v64 = vld [vmem:[%s0 + $0xb8] sm:$0xff]
    %v65 = vld [vmem:[%s0 + $0xc0] sm:$0xff]
    %v66 = vld [vmem:[%s0 + $0xc8] sm:$0xff]
    %v67 = vld [vmem:[%s0 + $0xd0] sm:$0xff]
    %v68 = vld [vmem:[%s0 + $0xd8] sm:$0xff]
    %v69 = vld [vmem:[%s0 + $0xe0] sm:$0xff]
    %v70 = vld [vmem:[%s0 + $0xe8] sm:$0xff]
    %v71 = vld [vmem:[%s0 + $0xf0] sm:$0xff]
    %v72 = vld [vmem:[%s0 + $0xf8] sm:$0xff]
    %v73 = vld [vmem:[%s0 + $0x100] sm:$0xff]
    %v74 = vld [vmem:[%s0 + $0x108] sm:$0xff]
    %v75 = vld [vmem:[%s0 + $0x110] sm:$0xff]
    %v76 = vld [vmem:[%s0 + $0x118] sm:$0xff]
    %v77 = vld [vmem:[%s0 + $0x120] sm:$0xff]
    %v78 = vld [vmem:[%s0 + $0x128] sm:$0xff]
    %v79 = vld [vmem:[%s0 + $0x130] sm:$0xff]
    %v80 = vld [vmem:[%s0 + $0x138] sm:$0xff]
    %v81 = vld [vmem:[%s0 + $0x140] sm:$0xff]
    %v82 = vld [vmem:[%s0 + $0x148] sm:$0xff]
    %v83 = vld [vmem:[%s0 + $0x150] sm:$0xff]
    %v84 = vld [vmem:[%s0 + $0x158] sm:$0xff]
    %v85 = vld [vmem:[%s0 + $0x160] sm:$0xff]
    %v86 = vld [vmem:[%s0 + $0x168] sm:$0xff]
    %v87 = vld [vmem:[%s0 + $0x170] sm:$0xff]
    %v88 = vld [vmem:[%s0 + $0x178] sm:$0xff]
    %v89 = vld [vmem:[%s0 + $0x180] sm:$0xff]
    %v90 = vld [vmem:[%s0 + $0x188] sm:$0xff]
    %v91 = vld [vmem:[%s0 + $0x190] sm:$0xff]
    %v92 = vld [vmem:[%s0 + $0x198] sm:$0xff]
    %v93 = vld [vmem:[%s0 + $0x1a0] sm:$0xff]
    %v94 = vld [vmem:[%s0 + $0x1a8] sm:$0xff]
    %v95 = vld [vmem:[%s0 + $0x1b0] sm:$0xff]
    %v96 = vld [vmem:[%s0 + $0x1b8] sm:$0xff]
    %v97 = vld [vmem:[%s0 + $0x1c0] sm:$0xff]
    %v98 = vld [vmem:[%s0 + $0x1c8] sm:$0xff]
    %v99 = vld [vmem:[%s0 + $0x1d0] sm:$0xff]
    %v100 = vld [vmem:[%s0 + $0x1d8] sm:$0xff]
    %v101 = vld [vmem:[%s0 + $0x1e0] sm:$0xff]
    %v102 = vld [vmem:[%s0 + $0x1e8] sm:$0xff]
    %v103 = vld [vmem:[%s0 + $0x1f0] sm:$0xff]
    %v104 = vld [vmem:[%s0 + $0x1f8] sm:$0xff]
    %v105 = vld [vmem:[%s2] sm:$0xff]
    %v106 = vld [vmem:[%s2 + $0x8] sm:$0xff]
    %v107 = vld [vmem:[%s2 + $0x10] sm:$0xff]
    %v108 = vld [vmem:[%s2 + $0x18] sm:$0xff]
    %v109 = vld [vmem:[%s2 + $0x20] sm:$0xff]
    %111 = vset.pattern.permute.xlu0 0
    %112 = vperm.xlu0 %111, %v105
    %v113 = vpop.permute.xlu0 %112
    %116 = vset.pattern.permute.xlu0 0
    %117 = vperm.xlu0 %116, %v106
    %v118 = vpop.permute.xlu0 %117
    %121 = vset.pattern.permute.xlu0 0
    %122 = vperm.xlu0 %121, %v107
    %v123 = vpop.permute.xlu0 %122
    %126 = vset.pattern.permute.xlu0 0
    %127 = vperm.xlu0 %126, %v108
    %v128 = vpop.permute.xlu0 %127
    %131 = vset.pattern.permute.xlu0 0
    %132 = vperm.xlu0 %131, %v109
    %v133 = vpop.permute.xlu0 %132
    %vm135 = vcmask 31744
    %v137 = vsel %vm135, %v36, 0
    %v140 = vsel %vm135, %v37, 0
    %v143 = vsel %vm135, %v38, 0
    %v146 = vsel %vm135, %v39, 0
    %v149 = vsel %vm135, %v40, 0
    %v152 = vsel %vm135, %v41, 0
    %v155 = vsel %vm135, %v42, 0
    %v158 = vsel %vm135, %v43, 0
    %v161 = vsel %vm135, %v44, 0
    %v164 = vsel %vm135, %v45, 0
    %v167 = vsel %vm135, %v46, 0
    %v170 = vsel %vm135, %v47, 0
    %v173 = vsel %vm135, %v48, 0
    %v176 = vsel %vm135, %v49, 0
    %v179 = vsel %vm135, %v50, 0
    %v182 = vsel %vm135, %v51, 0
    %v185 = vsel %vm135, %v52, 0
    %v188 = vsel %vm135, %v53, 0
    %v191 = vsel %vm135, %v54, 0
    %v194 = vsel %vm135, %v55, 0
    %v197 = vsel %vm135, %v56, 0
    %v200 = vsel %vm135, %v57, 0
    %v203 = vsel %vm135, %v58, 0
    %v206 = vsel %vm135, %v59, 0
    %v209 = vsel %vm135, %v60, 0
    %v212 = vsel %vm135, %v61, 0
    %v215 = vsel %vm135, %v62, 0
    %v218 = vsel %vm135, %v63, 0
    %v221 = vsel %vm135, %v64, 0
    %v224 = vsel %vm135, %v65, 0
    %v227 = vsel %vm135, %v66, 0
    %v230 = vsel %vm135, %v67, 0
    %v233 = vsel %vm135, %v68, 0
    %v236 = vsel %vm135, %v69, 0
    %v239 = vsel %vm135, %v70, 0
    %v242 = vsel %vm135, %v71, 0
    %v245 = vsel %vm135, %v72, 0
    %v248 = vsel %vm135, %v73, 0
    %v251 = vsel %vm135, %v74, 0
    %v254 = vsel %vm135, %v75, 0
    %v257 = vsel %vm135, %v76, 0
    %v260 = vsel %vm135, %v77, 0
    %v263 = vsel %vm135, %v78, 0
    %v266 = vsel %vm135, %v79, 0
    %v269 = vsel %vm135, %v80, 0
    %v272 = vsel %vm135, %v81, 0
    %v275 = vsel %vm135, %v82, 0
    %v278 = vsel %vm135, %v83, 0
    %v281 = vsel %vm135, %v84, 0
    %v284 = vsel %vm135, %v85, 0
    %v287 = vsel %vm135, %v86, 0
    %v290 = vsel %vm135, %v87, 0
    %v293 = vsel %vm135, %v88, 0
    %v296 = vsel %vm135, %v89, 0
    %v299 = vsel %vm135, %v90, 0
    %v302 = vsel %vm135, %v91, 0
    %v305 = vsel %vm135, %v92, 0
    %v308 = vsel %vm135, %v93, 0
    %v311 = vsel %vm135, %v94, 0
    %v314 = vsel %vm135, %v95, 0
    %v317 = vsel %vm135, %v96, 0
    %v320 = vsel %vm135, %v97, 0
    %v323 = vsel %vm135, %v98, 0
    %v326 = vsel %vm135, %v99, 0
    %v329 = vsel %vm135, %v100, 0
    %v332 = vsel %vm135, %v101, 0
    %v335 = vsel %vm135, %v102, 0
    %v338 = vsel %vm135, %v103, 0
    %v341 = vsel %vm135, %v104, 0
    %343 = vmatprep.subr.mxu0 0.0
    %344 = vmatpush1.xpose.msra.mxu0 %v152
    %345 = vmatprep.subr.mxu0 0.0
    %346 = vmatpush1.xpose.msra.mxu0 %v155
    %347 = vmatprep.subr.mxu0 0.0
    %348 = vmatpush1.xpose.msra.mxu0 %v158
    %349 = vmatprep.subr.mxu0 0.0
    %350 = vmatpush1.xpose.msra.mxu0 %v161
    %351 = vmatprep.subr.mxu0 0.0
    %352 = vmatpush1.xpose.msra.mxu0 %v164
    %353 = vmatprep.subr.mxu0 0.0
    %354 = vmatpush1.xpose.msra.mxu0 %v167
    %355 = vmatprep.subr.mxu0 0.0
    %356 = vmatpush1.xpose.msra.mxu0 %v170
    %357 = vmatprep.subr.mxu0 0.0
    %358 = vmatpush1.xpose.msra.mxu0 %v173
    %359 = vmatprep.subr.mxu0 0.0
    %360 = vmatpush1.xpose.msra.mxu0 %v176
    %361 = vmatprep.subr.mxu0 0.0
    %362 = vmatpush1.xpose.msra.mxu0 %v179
    %363 = vmatprep.subr.mxu0 0.0
    %364 = vmatpush1.xpose.msra.mxu0 %v182
    %365 = vmatprep.subr.mxu0 0.0
    %366 = vmatpush1.xpose.msra.mxu0 %v185
    %367 = vmatprep.subr.mxu0 0.0
    %368 = vmatpush1.xpose.msra.mxu0 %v188
    %369 = vmatprep.subr.mxu0 0.0
    %370 = vmatpush1.xpose.msra.mxu0 %v191
    %371 = vmatprep.subr.mxu0 0.0
    %372 = vmatpush1.xpose.msra.mxu0 %v194
    %373 = vmatprep.subr.mxu0 0.0
    %374 = vmatpush1.xpose.msra.mxu0 %v197
    %375 = vmatprep.subr.mxu0 0.0
    %376 = vmatpush1.xpose.msra.mxu0 %v200
    %377 = vmatprep.subr.mxu0 0.0
    %378 = vmatpush1.xpose.msra.mxu0 %v203
    %379 = vmatprep.subr.mxu0 0.0
    %380 = vmatpush1.xpose.msra.mxu0 %v206
    %381 = vmatprep.subr.mxu0 0.0
    %382 = vmatpush1.xpose.msra.mxu0 %v209
    %383 = vmatprep.subr.mxu0 0.0
    %384 = vmatpush1.xpose.msra.mxu0 %v212
    %385 = vmatprep.subr.mxu0 0.0
    %386 = vmatpush1.xpose.msra.mxu0 %v215
    %387 = vmatprep.subr.mxu0 0.0
    %388 = vmatpush1.xpose.msra.mxu0 %v218
    %389 = vmatprep.subr.mxu0 0.0
    %390 = vmatpush1.xpose.msra.mxu0 %v221
    %391 = vmatprep.subr.mxu0 0.0
    %392 = vmatpush1.xpose.msra.mxu0 %v224
    %393 = vmatprep.subr.mxu0 0.0
    %394 = vmatpush1.xpose.msra.mxu0 %v227
    %395 = vmatprep.subr.mxu0 0.0
    %396 = vmatpush1.xpose.msra.mxu0 %v230
    %397 = vmatprep.subr.mxu0 0.0
    %398 = vmatpush1.xpose.msra.mxu0 %v233
    %399 = vmatprep.subr.mxu0 0.0
    %400 = vmatpush1.xpose.msra.mxu0 %v236
    %401 = vmatprep.subr.mxu0 0.0
    %402 = vmatpush1.xpose.msra.mxu0 %v239
    %403 = vmatprep.subr.mxu0 0.0
    %404 = vmatpush1.xpose.msra.mxu0 %v242
    %405 = vmatprep.subr.mxu0 0.0
    %406 = vmatpush1.xpose.msra.mxu0 %v245
    %407 = vmatprep.mubr.f32.mxu0 0.0
    %408 = vmatmul.mubr.f32.gmra.mrb[0].mxu0 %v137
    %v409 = vpop.f32.mrb[0].mxu0
    %v410 = vadd.f32 %v113, %v409
    %v411 = vpop.f32.mrb[0].mxu0
    %v412 = vadd.f32 %v113, %v411
    %413 = vmatprep.mubr.f32.mxu0 0.0
    %414 = vmatmul.mubr.f32.gmra.mrb[0].mxu0 %v140
    %v415 = vpop.f32.mrb[0].mxu0
    %v416 = vadd.f32 %v118, %v415
    %v417 = vpop.f32.mrb[0].mxu0
    %v418 = vadd.f32 %v118, %v417
    %419 = vmatprep.mubr.f32.mxu0 0.0
    %420 = vmatmul.mubr.f32.gmra.mrb[0].mxu0 %v143
    %v421 = vpop.f32.mrb[0].mxu0
    %v422 = vadd.f32 %v123, %v421
    %v423 = vpop.f32.mrb[0].mxu0
    %v424 = vadd.f32 %v123, %v423
    %425 = vmatprep.mubr.f32.mxu0 0.0
    %426 = vmatmul.mubr.f32.gmra.mrb[0].mxu0 %v146
    %v427 = vpop.f32.mrb[0].mxu0
    %v428 = vadd.f32 %v128, %v427
    %v429 = vpop.f32.mrb[0].mxu0
    %v430 = vadd.f32 %v128, %v429
    %431 = vmatprep.mubr.f32.mxu0 0.0
    %432 = vmatmul.mubr.f32.gmra.mrb[0].mxu0 %v149
    %v433 = vpop.f32.mrb[0].mxu0
    %v434 = vadd.f32 %v133, %v433
    %v435 = vpop.f32.mrb[0].mxu0
    %v436 = vadd.f32 %v133, %v435
    %437 = vdwg.mxu0
    %438 = vmatprep.subr.mxu0 0.0
    %439 = vmatpush1.xpose.msra.mxu0 %v248
    %440 = vmatprep.subr.mxu0 0.0
    %441 = vmatpush1.xpose.msra.mxu0 %v251
    %442 = vmatprep.subr.mxu0 0.0
    %443 = vmatpush1.xpose.msra.mxu0 %v254
    %444 = vmatprep.subr.mxu0 0.0
    %445 = vmatpush1.xpose.msra.mxu0 %v257
    %446 = vmatprep.subr.mxu0 0.0
    %447 = vmatpush1.xpose.msra.mxu0 %v260
    %448 = vmatprep.subr.mxu0 0.0
    %449 = vmatpush1.xpose.msra.mxu0 %v263
    %450 = vmatprep.subr.mxu0 0.0
    %451 = vmatpush1.xpose.msra.mxu0 %v266
    %452 = vmatprep.subr.mxu0 0.0
    %453 = vmatpush1.xpose.msra.mxu0 %v269
    %454 = vmatprep.subr.mxu0 0.0
    %455 = vmatpush1.xpose.msra.mxu0 %v272
    %456 = vmatprep.subr.mxu0 0.0
    %457 = vmatpush1.xpose.msra.mxu0 %v275
    %458 = vmatprep.subr.mxu0 0.0
    %459 = vmatpush1.xpose.msra.mxu0 %v278
    %460 = vmatprep.subr.mxu0 0.0
    %461 = vmatpush1.xpose.msra.mxu0 %v281
    %462 = vmatprep.subr.mxu0 0.0
    %463 = vmatpush1.xpose.msra.mxu0 %v284
    %464 = vmatprep.subr.mxu0 0.0
    %465 = vmatpush1.xpose.msra.mxu0 %v287
    %466 = vmatprep.subr.mxu0 0.0
    %467 = vmatpush1.xpose.msra.mxu0 %v290
    %468 = vmatprep.subr.mxu0 0.0
    %469 = vmatpush1.xpose.msra.mxu0 %v293
    %470 = vmatprep.subr.mxu0 0.0
    %471 = vmatpush1.xpose.msra.mxu0 %v296
    %472 = vmatprep.subr.mxu0 0.0
    %473 = vmatpush1.xpose.msra.mxu0 %v299
    %474 = vmatprep.subr.mxu0 0.0
    %475 = vmatpush1.xpose.msra.mxu0 %v302
    %476 = vmatprep.subr.mxu0 0.0
    %477 = vmatpush1.xpose.msra.mxu0 %v305
    %478 = vmatprep.subr.mxu0 0.0
    %479 = vmatpush1.xpose.msra.mxu0 %v308
    %480 = vmatprep.subr.mxu0 0.0
    %481 = vmatpush1.xpose.msra.mxu0 %v311
    %482 = vmatprep.subr.mxu0 0.0
    %483 = vmatpush1.xpose.msra.mxu0 %v314
    %484 = vmatprep.subr.mxu0 0.0
    %485 = vmatpush1.xpose.msra.mxu0 %v317
    %486 = vmatprep.subr.mxu0 0.0
    %487 = vmatpush1.xpose.msra.mxu0 %v320
    %488 = vmatprep.subr.mxu0 0.0
    %489 = vmatpush1.xpose.msra.mxu0 %v323
    %490 = vmatprep.subr.mxu0 0.0
    %491 = vmatpush1.xpose.msra.mxu0 %v326
    %492 = vmatprep.subr.mxu0 0.0
    %493 = vmatpush1.xpose.msra.mxu0 %v329
    %494 = vmatprep.subr.mxu0 0.0
    %495 = vmatpush1.xpose.msra.mxu0 %v332
    %496 = vmatprep.subr.mxu0 0.0
    %497 = vmatpush1.xpose.msra.mxu0 %v335
    %498 = vmatprep.subr.mxu0 0.0
    %499 = vmatpush1.xpose.msra.mxu0 %v338
    %500 = vmatprep.subr.mxu0 0.0
    %501 = vmatpush1.xpose.msra.mxu0 %v341
    %502 = vmatprep.mubr.f32.mxu0 0.0
    %503 = vmatmul.mubr.f32.gmra.mrb[0].mxu0 %v137
    %v504 = vpop.f32.mrb[0].mxu0
    %v505 = vadd.f32 %v113, %v504
    %v506 = vpop.f32.mrb[0].mxu0
    %v507 = vadd.f32 %v113, %v506
    %508 = vmatprep.mubr.f32.mxu0 0.0
    %509 = vmatmul.mubr.f32.gmra.mrb[0].mxu0 %v140
    %v510 = vpop.f32.mrb[0].mxu0
    %v511 = vadd.f32 %v118, %v510
    %v512 = vpop.f32.mrb[0].mxu0
    %v513 = vadd.f32 %v118, %v512
    %514 = vmatprep.mubr.f32.mxu0 0.0
    %515 = vmatmul.mubr.f32.gmra.mrb[0].mxu0 %v143
    %v516 = vpop.f32.mrb[0].mxu0
    %v517 = vadd.f32 %v123, %v516
    %v518 = vpop.f32.mrb[0].mxu0
    %v519 = vadd.f32 %v123, %v518
    %520 = vmatprep.mubr.f32.mxu0 0.0
    %521 = vmatmul.mubr.f32.gmra.mrb[0].mxu0 %v146
    %v522 = vpop.f32.mrb[0].mxu0
    %v523 = vadd.f32 %v128, %v522
    %v524 = vpop.f32.mrb[0].mxu0
    %v525 = vadd.f32 %v128, %v524
    %526 = vmatprep.mubr.f32.mxu0 0.0
    %527 = vmatmul.mubr.f32.gmra.mrb[0].mxu0 %v149
    %v528 = vpop.f32.mrb[0].mxu0
    %v529 = vadd.f32 %v133, %v528
    %v530 = vpop.f32.mrb[0].mxu0
    %v531 = vadd.f32 %v133, %v530
    %532 = vdwg.mxu0
    %v533 = vld [vmem:[%s3] sm:$0xf]
    %v534 = vld [vmem:[%s3 + $0x4] sm:$0xf]
    %v535 = vld [vmem:[%s3 + $0x8] sm:$0xf]
    %v536 = vld [vmem:[%s3 + $0xc] sm:$0xf]
    %v537 = vpack.c.bf16 %v416, %v410
    %v538 = vpack.c.bf16 %v418, %v412
    %v539 = vpack.c.bf16 %v511, %v505
    %v540 = vpack.c.bf16 %v513, %v507
    %v541 = vpack.c.bf16 %v428, %v422
    %v542 = vpack.c.bf16 %v430, %v424
    %v543 = vpack.c.bf16 %v523, %v517
    %v544 = vpack.c.bf16 %v525, %v519
    %v545 = vld [vmem:[%s4] sm:$0xff]
    %v546 = vld [vmem:[%s4 + $0x8] sm:$0xff]
    %v547 = vld [vmem:[%s4 + $0x10] sm:$0xff]
    %v548 = vld [vmem:[%s4 + $0x18] sm:$0xff]
    %550 = vset.pattern.permute.xlu0 0
    %551 = vperm.xlu0 %550, %v545
    %v552 = vpop.permute.xlu0 %551
    %555 = vset.pattern.permute.xlu0 0
    %556 = vperm.xlu0 %555, %v546
    %v557 = vpop.permute.xlu0 %556
    %560 = vset.pattern.permute.xlu0 0
    %561 = vperm.xlu0 %560, %v547
    %v562 = vpop.permute.xlu0 %561
    %565 = vset.pattern.permute.xlu0 0
    %566 = vperm.xlu0 %565, %v548
    %v567 = vpop.permute.xlu0 %566
    %v573 = vunpack.c.l.b16 %v533
    %v574 = vunpack.c.l.b16 %v534
    %v575 = vunpack.c.l.b16 %v535
    %v576 = vunpack.c.l.b16 %v536
    %v577 = vpack.c.b16 %v574, %v573
    %v578 = vpack.c.b16 %v576, %v575
    %vm579 = vcmask 261120
    %v581 = vsel %vm579, %v577, 0
    %v584 = vsel %vm579, %v578, 0
    %586 = vmatprep.subr.bf16.mxu0 %v538
    %587 = vmatpush1.bf16.msra.mxu0 %v537
    %588 = vmatprep.subr.bf16.mxu0 %v542
    %589 = vmatpush1.bf16.msra.mxu0 %v541
    %590 = vmatprep.subr.bf16.mxu0 0
    %591 = vmatpush1.bf16.msra.mxu0 0
    %592 = vmatprep.subr.bf16.mxu0 0
    %593 = vmatpush1.bf16.msra.mxu0 0
    %594 = vmatprep.subr.bf16.mxu0 0
    %595 = vmatpush1.bf16.msra.mxu0 0
    %596 = vmatprep.subr.bf16.mxu0 0
    %597 = vmatpush1.bf16.msra.mxu0 0
    %598 = vmatprep.subr.bf16.mxu0 0
    %599 = vmatpush1.bf16.msra.mxu0 0
    %600 = vmatprep.subr.bf16.mxu0 0
    %601 = vmatpush1.bf16.msra.mxu0 0
    %602 = vmatprep.subr.bf16.mxu0 0
    %603 = vmatpush1.bf16.msra.mxu0 0
    %604 = vmatprep.subr.bf16.mxu0 0
    %605 = vmatpush1.bf16.msra.mxu0 0
    %606 = vmatprep.subr.bf16.mxu0 0
    %607 = vmatpush1.bf16.msra.mxu0 0
    %608 = vmatprep.subr.bf16.mxu0 0
    %609 = vmatpush1.bf16.msra.mxu0 0
    %610 = vmatprep.subr.bf16.mxu0 0
    %611 = vmatpush1.bf16.msra.mxu0 0
    %612 = vmatprep.subr.bf16.mxu0 0
    %613 = vmatpush1.bf16.msra.mxu0 0
    %614 = vmatprep.subr.bf16.mxu0 0
    %615 = vmatpush1.bf16.msra.mxu0 0
    %616 = vmatprep.subr.bf16.mxu0 0
    %617 = vmatpush1.bf16.msra.mxu0 0
    %618 = vmatprep.mubr.bf16.mxu0 0
    %619 = vmatmul.mubr.bf16.gmra.mrb[0].mxu0 %v581
    %v620 = vpop.f32.mrb[0].mxu0
    %v621 = vadd.f32 %v552, %v620
    %v622 = vpop.f32.mrb[0].mxu0
    %v623 = vadd.f32 %v552, %v622
    %v624 = vpop.f32.mrb[0].mxu0
    %v625 = vadd.f32 %v557, %v624
    %v626 = vpop.f32.mrb[0].mxu0
    %v627 = vadd.f32 %v557, %v626
    %628 = vmatprep.mubr.bf16.mxu0 0
    %629 = vmatmul.mubr.bf16.gmra.mrb[0].mxu0 %v584
    %v630 = vpop.f32.mrb[0].mxu0
    %v631 = vadd.f32 %v562, %v630
    %v632 = vpop.f32.mrb[0].mxu0
    %v633 = vadd.f32 %v562, %v632
    %v634 = vpop.f32.mrb[0].mxu0
    %v635 = vadd.f32 %v567, %v634
    %v636 = vpop.f32.mrb[0].mxu0
    %v637 = vadd.f32 %v567, %v636
    %638 = vdwg.mxu0
    %639 = vmatprep.subr.bf16.mxu0 %v540
    %640 = vmatpush1.bf16.msra.mxu0 %v539
    %641 = vmatprep.subr.bf16.mxu0 %v544
    %642 = vmatpush1.bf16.msra.mxu0 %v543
    %643 = vmatprep.subr.bf16.mxu0 0
    %644 = vmatpush1.bf16.msra.mxu0 0
    %645 = vmatprep.subr.bf16.mxu0 0
    %646 = vmatpush1.bf16.msra.mxu0 0
    %647 = vmatprep.subr.bf16.mxu0 0
    %648 = vmatpush1.bf16.msra.mxu0 0
    %649 = vmatprep.subr.bf16.mxu0 0
    %650 = vmatpush1.bf16.msra.mxu0 0
    %651 = vmatprep.subr.bf16.mxu0 0
    %652 = vmatpush1.bf16.msra.mxu0 0
    %653 = vmatprep.subr.bf16.mxu0 0
    %654 = vmatpush1.bf16.msra.mxu0 0
    %655 = vmatprep.subr.bf16.mxu0 0
    %656 = vmatpush1.bf16.msra.mxu0 0
    %657 = vmatprep.subr.bf16.mxu0 0
    %658 = vmatpush1.bf16.msra.mxu0 0
    %659 = vmatprep.subr.bf16.mxu0 0
    %660 = vmatpush1.bf16.msra.mxu0 0
    %661 = vmatprep.subr.bf16.mxu0 0
    %662 = vmatpush1.bf16.msra.mxu0 0
    %663 = vmatprep.subr.bf16.mxu0 0
    %664 = vmatpush1.bf16.msra.mxu0 0
    %665 = vmatprep.subr.bf16.mxu0 0
    %666 = vmatpush1.bf16.msra.mxu0 0
    %667 = vmatprep.subr.bf16.mxu0 0
    %668 = vmatpush1.bf16.msra.mxu0 0
    %669 = vmatprep.subr.bf16.mxu0 0
    %670 = vmatpush1.bf16.msra.mxu0 0
    %671 = vmatprep.mubr.bf16.mxu0 0
    %672 = vmatmul.mubr.bf16.gmra.mrb[0].mxu0 %v581
    %v673 = vpop.f32.mrb[0].mxu0
    %v674 = vadd.f32 %v552, %v673
    %v675 = vpop.f32.mrb[0].mxu0
    %v676 = vadd.f32 %v552, %v675
    %v677 = vpop.f32.mrb[0].mxu0
    %v678 = vadd.f32 %v557, %v677
    %v679 = vpop.f32.mrb[0].mxu0
    %v680 = vadd.f32 %v557, %v679
    %681 = vmatprep.mubr.bf16.mxu0 0
    %682 = vmatmul.mubr.bf16.gmra.mrb[0].mxu0 %v584
    %v683 = vpop.f32.mrb[0].mxu0
    %v684 = vadd.f32 %v562, %v683
    %v685 = vpop.f32.mrb[0].mxu0
    %v686 = vadd.f32 %v562, %v685
    %v687 = vpop.f32.mrb[0].mxu0
    %v688 = vadd.f32 %v567, %v687
    %v689 = vpop.f32.mrb[0].mxu0
    %v690 = vadd.f32 %v567, %v689
    %691 = vdwg.mxu0
    %v692 = vtanh.pop %v621
    %v693 = vtanh.pop %v623
    %v694 = vtanh.pop %v674
    %v695 = vtanh.pop %v676
    %v696 = vtanh.pop %v625
    %v697 = vtanh.pop %v627
    %v698 = vtanh.pop %v678
    %v699 = vtanh.pop %v680
    %v700 = vtanh.pop %v631
    %v701 = vtanh.pop %v633
    %v702 = vtanh.pop %v684
    %v703 = vtanh.pop %v686
    %v704 = vtanh.pop %v635
    %v705 = vtanh.pop %v637
    %v706 = vtanh.pop %v688
    %v707 = vtanh.pop %v690
    %v708 = vld [vmem:[%s5] sm:$0xf]
    %v709 = vld [vmem:[%s5 + $0x4] sm:$0xf]
    %v710 = vld [vmem:[%s5 + $0x8] sm:$0xf]
    %v711 = vld [vmem:[%s5 + $0xc] sm:$0xf]
    %v712 = vpack.c.bf16 %v696, %v692
    %v713 = vpack.c.bf16 %v697, %v693
    %v714 = vpack.c.bf16 %v698, %v694
    %v715 = vpack.c.bf16 %v699, %v695
    %v716 = vpack.c.bf16 %v704, %v700
    %v717 = vpack.c.bf16 %v705, %v701
    %v718 = vpack.c.bf16 %v706, %v702
    %v719 = vpack.c.bf16 %v707, %v703
    %v720 = vld [vmem:[%s6] sm:$0xff]
    %v721 = vld [vmem:[%s6 + $0x8] sm:$0xff]
    %v722 = vld [vmem:[%s6 + $0x10] sm:$0xff]
    %v723 = vld [vmem:[%s6 + $0x18] sm:$0xff]
    %725 = vset.pattern.permute.xlu0 0
    %726 = vperm.xlu0 %725, %v720
    %v727 = vpop.permute.xlu0 %726
    %730 = vset.pattern.permute.xlu0 0
    %731 = vperm.xlu0 %730, %v721
    %v732 = vpop.permute.xlu0 %731
    %735 = vset.pattern.permute.xlu0 0
    %736 = vperm.xlu0 %735, %v722
    %v737 = vpop.permute.xlu0 %736
    %740 = vset.pattern.permute.xlu0 0
    %741 = vperm.xlu0 %740, %v723
    %v742 = vpop.permute.xlu0 %741
    %v748 = vunpack.c.l.b16 %v708
    %v749 = vunpack.c.l.b16 %v709
    %v750 = vunpack.c.l.b16 %v710
    %v751 = vunpack.c.l.b16 %v711
    %v752 = vpack.c.b16 %v749, %v748
    %v753 = vpack.c.b16 %v751, %v750
    %v755 = vsel %vm579, %v752, 0
    %v758 = vsel %vm579, %v753, 0
    %760 = vmatprep.subr.bf16.mxu0 %v713
    %761 = vmatpush1.bf16.msra.mxu0 %v712
    %762 = vmatprep.subr.bf16.mxu0 %v717
    %763 = vmatpush1.bf16.msra.mxu0 %v716
    %764 = vmatprep.subr.bf16.mxu0 0
    %765 = vmatpush1.bf16.msra.mxu0 0
    %766 = vmatprep.subr.bf16.mxu0 0
    %767 = vmatpush1.bf16.msra.mxu0 0
    %768 = vmatprep.subr.bf16.mxu0 0
    %769 = vmatpush1.bf16.msra.mxu0 0
    %770 = vmatprep.subr.bf16.mxu0 0
    %771 = vmatpush1.bf16.msra.mxu0 0
    %772 = vmatprep.subr.bf16.mxu0 0
    %773 = vmatpush1.bf16.msra.mxu0 0
    %774 = vmatprep.subr.bf16.mxu0 0
    %775 = vmatpush1.bf16.msra.mxu0 0
    %776 = vmatprep.subr.bf16.mxu0 0
    %777 = vmatpush1.bf16.msra.mxu0 0
    %778 = vmatprep.subr.bf16.mxu0 0
    %779 = vmatpush1.bf16.msra.mxu0 0
    %780 = vmatprep.subr.bf16.mxu0 0
    %781 = vmatpush1.bf16.msra.mxu0 0
    %782 = vmatprep.subr.bf16.mxu0 0
    %783 = vmatpush1.bf16.msra.mxu0 0
    %784 = vmatprep.subr.bf16.mxu0 0
    %785 = vmatpush1.bf16.msra.mxu0 0
    %786 = vmatprep.subr.bf16.mxu0 0
    %787 = vmatpush1.bf16.msra.mxu0 0
    %788 = vmatprep.subr.bf16.mxu0 0
    %789 = vmatpush1.bf16.msra.mxu0 0
    %790 = vmatprep.subr.bf16.mxu0 0
    %791 = vmatpush1.bf16.msra.mxu0 0
    %792 = vmatprep.mubr.bf16.mxu0 0
    %793 = vmatmul.mubr.bf16.gmra.mrb[0].mxu0 %v755
    %v794 = vpop.f32.mrb[0].mxu0
    %v795 = vadd.f32 %v727, %v794
    %v796 = vpop.f32.mrb[0].mxu0
    %v797 = vadd.f32 %v727, %v796
    %v798 = vpop.f32.mrb[0].mxu0
    %v799 = vadd.f32 %v732, %v798
    %v800 = vpop.f32.mrb[0].mxu0
    %v801 = vadd.f32 %v732, %v800
    %802 = vmatprep.mubr.bf16.mxu0 0
    %803 = vmatmul.mubr.bf16.gmra.mrb[0].mxu0 %v758
    %v804 = vpop.f32.mrb[0].mxu0
    %v805 = vadd.f32 %v737, %v804
    %v806 = vpop.f32.mrb[0].mxu0
    %v807 = vadd.f32 %v737, %v806
    %v808 = vpop.f32.mrb[0].mxu0
    %v809 = vadd.f32 %v742, %v808
    %v810 = vpop.f32.mrb[0].mxu0
    %v811 = vadd.f32 %v742, %v810
    %812 = vdwg.mxu0
    %813 = vmatprep.subr.bf16.mxu0 %v715
    %814 = vmatpush1.bf16.msra.mxu0 %v714
    %815 = vmatprep.subr.bf16.mxu0 %v719
    %816 = vmatpush1.bf16.msra.mxu0 %v718
    %817 = vmatprep.subr.bf16.mxu0 0
    %818 = vmatpush1.bf16.msra.mxu0 0
    %819 = vmatprep.subr.bf16.mxu0 0
    %820 = vmatpush1.bf16.msra.mxu0 0
    %821 = vmatprep.subr.bf16.mxu0 0
    %822 = vmatpush1.bf16.msra.mxu0 0
    %823 = vmatprep.subr.bf16.mxu0 0
    %824 = vmatpush1.bf16.msra.mxu0 0
    %825 = vmatprep.subr.bf16.mxu0 0
    %826 = vmatpush1.bf16.msra.mxu0 0
    %827 = vmatprep.subr.bf16.mxu0 0
    %828 = vmatpush1.bf16.msra.mxu0 0
    %829 = vmatprep.subr.bf16.mxu0 0
    %830 = vmatpush1.bf16.msra.mxu0 0
    %831 = vmatprep.subr.bf16.mxu0 0
    %832 = vmatpush1.bf16.msra.mxu0 0
    %833 = vmatprep.subr.bf16.mxu0 0
    %834 = vmatpush1.bf16.msra.mxu0 0
    %835 = vmatprep.subr.bf16.mxu0 0
    %836 = vmatpush1.bf16.msra.mxu0 0
    %837 = vmatprep.subr.bf16.mxu0 0
    %838 = vmatpush1.bf16.msra.mxu0 0
    %839 = vmatprep.subr.bf16.mxu0 0
    %840 = vmatpush1.bf16.msra.mxu0 0
    %841 = vmatprep.subr.bf16.mxu0 0
    %842 = vmatpush1.bf16.msra.mxu0 0
    %843 = vmatprep.subr.bf16.mxu0 0
    %844 = vmatpush1.bf16.msra.mxu0 0
    %845 = vmatprep.mubr.bf16.mxu0 0
    %846 = vmatmul.mubr.bf16.gmra.mrb[0].mxu0 %v755
    %v847 = vpop.f32.mrb[0].mxu0
    %v848 = vadd.f32 %v727, %v847
    %v849 = vpop.f32.mrb[0].mxu0
    %v850 = vadd.f32 %v727, %v849
    %v851 = vpop.f32.mrb[0].mxu0
    %v852 = vadd.f32 %v732, %v851
    %v853 = vpop.f32.mrb[0].mxu0
    %v854 = vadd.f32 %v732, %v853
    %855 = vmatprep.mubr.bf16.mxu0 0
    %856 = vmatmul.mubr.bf16.gmra.mrb[0].mxu0 %v758
    %v857 = vpop.f32.mrb[0].mxu0
    %v858 = vadd.f32 %v737, %v857
    %v859 = vpop.f32.mrb[0].mxu0
    %v860 = vadd.f32 %v737, %v859
    %v861 = vpop.f32.mrb[0].mxu0
    %v862 = vadd.f32 %v742, %v861
    %v863 = vpop.f32.mrb[0].mxu0
    %v864 = vadd.f32 %v742, %v863
    %865 = vdwg.mxu0
    %v866 = vtanh.pop %v795
    %v867 = vtanh.pop %v797
    %v868 = vtanh.pop %v848
    %v869 = vtanh.pop %v850
    %v870 = vtanh.pop %v799
    %v871 = vtanh.pop %v801
    %v872 = vtanh.pop %v852
    %v873 = vtanh.pop %v854
    %v874 = vtanh.pop %v805
    %v875 = vtanh.pop %v807
    %v876 = vtanh.pop %v858
    %v877 = vtanh.pop %v860
    %v878 = vtanh.pop %v809
    %v879 = vtanh.pop %v811
    %v880 = vtanh.pop %v862
    %v881 = vtanh.pop %v864
    %v882 = vadd.f32 %v866, %v410
    %v883 = vadd.f32 %v867, %v412
    %v884 = vadd.f32 %v868, %v505
    %v885 = vadd.f32 %v869, %v507
    %v886 = vadd.f32 %v870, %v416
    %v887 = vadd.f32 %v871, %v418
    %v888 = vadd.f32 %v872, %v511
    %v889 = vadd.f32 %v873, %v513
    %v890 = vadd.f32 %v874, %v422
    %v891 = vadd.f32 %v875, %v424
    %v892 = vadd.f32 %v876, %v517
    %v893 = vadd.f32 %v877, %v519
    %v894 = vadd.f32 %v878, %v428
    %v895 = vadd.f32 %v879, %v430
    %v896 = vadd.f32 %v880, %v523
    %v897 = vadd.f32 %v881, %v525
    %s898 = scalar_lea.vmem %s3, 16
    %v899 = vld [vmem:[%s898] sm:$0xf]
    %v900 = vld [vmem:[%s898 + $0x4] sm:$0xf]
    %v901 = vld [vmem:[%s898 + $0x8] sm:$0xf]
    %v902 = vld [vmem:[%s898 + $0xc] sm:$0xf]
    %v903 = vpack.c.bf16 %v886, %v882
    %v904 = vpack.c.bf16 %v887, %v883
    %v905 = vpack.c.bf16 %v888, %v884
    %v906 = vpack.c.bf16 %v889, %v885
    %v907 = vpack.c.bf16 %v894, %v890
    %v908 = vpack.c.bf16 %v895, %v891
    %v909 = vpack.c.bf16 %v896, %v892
    %v910 = vpack.c.bf16 %v897, %v893
    %s911 = scalar_lea.vmem %s4, 32
    %v912 = vld [vmem:[%s911] sm:$0xff]
    %v913 = vld [vmem:[%s911 + $0x8] sm:$0xff]
    %v914 = vld [vmem:[%s911 + $0x10] sm:$0xff]
    %v915 = vld [vmem:[%s911 + $0x18] sm:$0xff]
    %917 = vset.pattern.permute.xlu0 0
    %918 = vperm.xlu0 %917, %v912
    %v919 = vpop.permute.xlu0 %918
    %922 = vset.pattern.permute.xlu0 0
    %923 = vperm.xlu0 %922, %v913
    %v924 = vpop.permute.xlu0 %923
    %927 = vset.pattern.permute.xlu0 0
    %928 = vperm.xlu0 %927, %v914
    %v929 = vpop.permute.xlu0 %928
    %932 = vset.pattern.permute.xlu0 0
    %933 = vperm.xlu0 %932, %v915
    %v934 = vpop.permute.xlu0 %933
    %v940 = vunpack.c.l.b16 %v899
    %v941 = vunpack.c.l.b16 %v900
    %v942 = vunpack.c.l.b16 %v901
    %v943 = vunpack.c.l.b16 %v902
    %v944 = vpack.c.b16 %v941, %v940
    %v945 = vpack.c.b16 %v943, %v942
    %v947 = vsel %vm579, %v944, 0
    %v950 = vsel %vm579, %v945, 0
    %952 = vmatprep.subr.bf16.mxu0 %v904
    %953 = vmatpush1.bf16.msra.mxu0 %v903
    %954 = vmatprep.subr.bf16.mxu0 %v908
    %955 = vmatpush1.bf16.msra.mxu0 %v907
    %956 = vmatprep.subr.bf16.mxu0 0
    %957 = vmatpush1.bf16.msra.mxu0 0
    %958 = vmatprep.subr.bf16.mxu0 0
    %959 = vmatpush1.bf16.msra.mxu0 0
    %960 = vmatprep.subr.bf16.mxu0 0
    %961 = vmatpush1.bf16.msra.mxu0 0
    %962 = vmatprep.subr.bf16.mxu0 0
    %963 = vmatpush1.bf16.msra.mxu0 0
    %964 = vmatprep.subr.bf16.mxu0 0
    %965 = vmatpush1.bf16.msra.mxu0 0
    %966 = vmatprep.subr.bf16.mxu0 0
    %967 = vmatpush1.bf16.msra.mxu0 0
    %968 = vmatprep.subr.bf16.mxu0 0
    %969 = vmatpush1.bf16.msra.mxu0 0
    %970 = vmatprep.subr.bf16.mxu0 0
    %971 = vmatpush1.bf16.msra.mxu0 0
    %972 = vmatprep.subr.bf16.mxu0 0
    %973 = vmatpush1.bf16.msra.mxu0 0
    %974 = vmatprep.subr.bf16.mxu0 0
    %975 = vmatpush1.bf16.msra.mxu0 0
    %976 = vmatprep.subr.bf16.mxu0 0
    %977 = vmatpush1.bf16.msra.mxu0 0
    %978 = vmatprep.subr.bf16.mxu0 0
    %979 = vmatpush1.bf16.msra.mxu0 0
    %980 = vmatprep.subr.bf16.mxu0 0
    %981 = vmatpush1.bf16.msra.mxu0 0
    %982 = vmatprep.subr.bf16.mxu0 0
    %983 = vmatpush1.bf16.msra.mxu0 0
    %984 = vmatprep.mubr.bf16.mxu0 0
    %985 = vmatmul.mubr.bf16.gmra.mrb[0].mxu0 %v947
    %v986 = vpop.f32.mrb[0].mxu0
    %v987 = vadd.f32 %v919, %v986
    %v988 = vpop.f32.mrb[0].mxu0
    %v989 = vadd.f32 %v919, %v988
    %v990 = vpop.f32.mrb[0].mxu0
    %v991 = vadd.f32 %v924, %v990
    %v992 = vpop.f32.mrb[0].mxu0
    %v993 = vadd.f32 %v924, %v992
    %994 = vmatprep.mubr.bf16.mxu0 0
    %995 = vmatmul.mubr.bf16.gmra.mrb[0].mxu0 %v950
    %v996 = vpop.f32.mrb[0].mxu0
    %v997 = vadd.f32 %v929, %v996
    %v998 = vpop.f32.mrb[0].mxu0
    %v999 = vadd.f32 %v929, %v998
    %v1000 = vpop.f32.mrb[0].mxu0
    %v1001 = vadd.f32 %v934, %v1000
    %v1002 = vpop.f32.mrb[0].mxu0
    %v1003 = vadd.f32 %v934, %v1002
    %1004 = vdwg.mxu0
    %1005 = vmatprep.subr.bf16.mxu0 %v906
    %1006 = vmatpush1.bf16.msra.mxu0 %v905
    %1007 = vmatprep.subr.bf16.mxu0 %v910
    %1008 = vmatpush1.bf16.msra.mxu0 %v909
    %1009 = vmatprep.subr.bf16.mxu0 0
    %1010 = vmatpush1.bf16.msra.mxu0 0
    %1011 = vmatprep.subr.bf16.mxu0 0
    %1012 = vmatpush1.bf16.msra.mxu0 0
    %1013 = vmatprep.subr.bf16.mxu0 0
    %1014 = vmatpush1.bf16.msra.mxu0 0
    %1015 = vmatprep.subr.bf16.mxu0 0
    %1016 = vmatpush1.bf16.msra.mxu0 0
    %1017 = vmatprep.subr.bf16.mxu0 0
    %1018 = vmatpush1.bf16.msra.mxu0 0
    %1019 = vmatprep.subr.bf16.mxu0 0
    %1020 = vmatpush1.bf16.msra.mxu0 0
    %1021 = vmatprep.subr.bf16.mxu0 0
    %1022 = vmatpush1.bf16.msra.mxu0 0
    %1023 = vmatprep.subr.bf16.mxu0 0
    %1024 = vmatpush1.bf16.msra.mxu0 0
    %1025 = vmatprep.subr.bf16.mxu0 0
    %1026 = vmatpush1.bf16.msra.mxu0 0
    %1027 = vmatprep.subr.bf16.mxu0 0
    %1028 = vmatpush1.bf16.msra.mxu0 0
    %1029 = vmatprep.subr.bf16.mxu0 0
    %1030 = vmatpush1.bf16.msra.mxu0 0
    %1031 = vmatprep.subr.bf16.mxu0 0
    %1032 = vmatpush1.bf16.msra.mxu0 0
    %1033 = vmatprep.subr.bf16.mxu0 0
    %1034 = vmatpush1.bf16.msra.mxu0 0
    %1035 = vmatprep.subr.bf16.mxu0 0
    %1036 = vmatpush1.bf16.msra.mxu0 0
    %1037 = vmatprep.mubr.bf16.mxu0 0
    %1038 = vmatmul.mubr.bf16.gmra.mrb[0].mxu0 %v947
    %v1039 = vpop.f32.mrb[0].mxu0
    %v1040 = vadd.f32 %v919, %v1039
    %v1041 = vpop.f32.mrb[0].mxu0
    %v1042 = vadd.f32 %v919, %v1041
    %v1043 = vpop.f32.mrb[0].mxu0
    %v1044 = vadd.f32 %v924, %v1043
    %v1045 = vpop.f32.mrb[0].mxu0
    %v1046 = vadd.f32 %v924, %v1045
    %1047 = vmatprep.mubr.bf16.mxu0 0
    %1048 = vmatmul.mubr.bf16.gmra.mrb[0].mxu0 %v950
    %v1049 = vpop.f32.mrb[0].mxu0
    %v1050 = vadd.f32 %v929, %v1049
    %v1051 = vpop.f32.mrb[0].mxu0
    %v1052 = vadd.f32 %v929, %v1051
    %v1053 = vpop.f32.mrb[0].mxu0
    %v1054 = vadd.f32 %v934, %v1053
    %v1055 = vpop.f32.mrb[0].mxu0
    %v1056 = vadd.f32 %v934, %v1055
    %1057 = vdwg.mxu0
    %v1058 = vtanh.pop %v987
    %v1059 = vtanh.pop %v989
    %v1060 = vtanh.pop %v1040
    %v1061 = vtanh.pop %v1042
    %v1062 = vtanh.pop %v991
    %v1063 = vtanh.pop %v993
    %v1064 = vtanh.pop %v1044
    %v1065 = vtanh.pop %v1046
    %v1066 = vtanh.pop %v997
    %v1067 = vtanh.pop %v999
    %v1068 = vtanh.pop %v1050
    %v1069 = vtanh.pop %v1052
    %v1070 = vtanh.pop %v1001
    %v1071 = vtanh.pop %v1003
    %v1072 = vtanh.pop %v1054
    %v1073 = vtanh.pop %v1056
    %s1074 = scalar_lea.vmem %s5, 16
    %v1075 = vld [vmem:[%s1074] sm:$0xf]
    %v1076 = vld [vmem:[%s1074 + $0x4] sm:$0xf]
    %v1077 = vld [vmem:[%s1074 + $0x8] sm:$0xf]
    %v1078 = vld [vmem:[%s1074 + $0xc] sm:$0xf]
    %v1079 = vpack.c.bf16 %v1062, %v1058
    %v1080 = vpack.c.bf16 %v1063, %v1059
    %v1081 = vpack.c.bf16 %v1064, %v1060
    %v1082 = vpack.c.bf16 %v1065, %v1061
    %v1083 = vpack.c.bf16 %v1070, %v1066
    %v1084 = vpack.c.bf16 %v1071, %v1067
    %v1085 = vpack.c.bf16 %v1072, %v1068
    %v1086 = vpack.c.bf16 %v1073, %v1069
    %s1087 = scalar_lea.vmem %s6, 32
    %v1088 = vld [vmem:[%s1087] sm:$0xff]
    %v1089 = vld [vmem:[%s1087 + $0x8] sm:$0xff]
    %v1090 = vld [vmem:[%s1087 + $0x10] sm:$0xff]
    %v1091 = vld [vmem:[%s1087 + $0x18] sm:$0xff]
    %1093 = vset.pattern.permute.xlu0 0
    %1094 = vperm.xlu0 %1093, %v1088
    %v1095 = vpop.permute.xlu0 %1094
    %1098 = vset.pattern.permute.xlu0 0
    %1099 = vperm.xlu0 %1098, %v1089
    %v1100 = vpop.permute.xlu0 %1099
    %1103 = vset.pattern.permute.xlu0 0
    %1104 = vperm.xlu0 %1103, %v1090
    %v1105 = vpop.permute.xlu0 %1104
    %1108 = vset.pattern.permute.xlu0 0
    %1109 = vperm.xlu0 %1108, %v1091
    %v1110 = vpop.permute.xlu0 %1109
    %v1116 = vunpack.c.l.b16 %v1075
    %v1117 = vunpack.c.l.b16 %v1076
    %v1118 = vunpack.c.l.b16 %v1077
    %v1119 = vunpack.c.l.b16 %v1078
    %v1120 = vpack.c.b16 %v1117, %v1116
    %v1121 = vpack.c.b16 %v1119, %v1118
    %v1123 = vsel %vm579, %v1120, 0
    %v1126 = vsel %vm579, %v1121, 0
    %1128 = vmatprep.subr.bf16.mxu0 %v1080
    %1129 = vmatpush1.bf16.msra.mxu0 %v1079
    %1130 = vmatprep.subr.bf16.mxu0 %v1084
    %1131 = vmatpush1.bf16.msra.mxu0 %v1083
    %1132 = vmatprep.subr.bf16.mxu0 0
    %1133 = vmatpush1.bf16.msra.mxu0 0
    %1134 = vmatprep.subr.bf16.mxu0 0
    %1135 = vmatpush1.bf16.msra.mxu0 0
    %1136 = vmatprep.subr.bf16.mxu0 0
    %1137 = vmatpush1.bf16.msra.mxu0 0
    %1138 = vmatprep.subr.bf16.mxu0 0
    %1139 = vmatpush1.bf16.msra.mxu0 0
    %1140 = vmatprep.subr.bf16.mxu0 0
    %1141 = vmatpush1.bf16.msra.mxu0 0
    %1142 = vmatprep.subr.bf16.mxu0 0
    %1143 = vmatpush1.bf16.msra.mxu0 0
    %1144 = vmatprep.subr.bf16.mxu0 0
    %1145 = vmatpush1.bf16.msra.mxu0 0
    %1146 = vmatprep.subr.bf16.mxu0 0
    %1147 = vmatpush1.bf16.msra.mxu0 0
    %1148 = vmatprep.subr.bf16.mxu0 0
    %1149 = vmatpush1.bf16.msra.mxu0 0
    %1150 = vmatprep.subr.bf16.mxu0 0
    %1151 = vmatpush1.bf16.msra.mxu0 0
    %1152 = vmatprep.subr.bf16.mxu0 0
    %1153 = vmatpush1.bf16.msra.mxu0 0
    %1154 = vmatprep.subr.bf16.mxu0 0
    %1155 = vmatpush1.bf16.msra.mxu0 0
    %1156 = vmatprep.subr.bf16.mxu0 0
    %1157 = vmatpush1.bf16.msra.mxu0 0
    %1158 = vmatprep.subr.bf16.mxu0 0
    %1159 = vmatpush1.bf16.msra.mxu0 0
    %1160 = vmatprep.mubr.bf16.mxu0 0
    %1161 = vmatmul.mubr.bf16.gmra.mrb[0].mxu0 %v1123
    %v1162 = vpop.f32.mrb[0].mxu0
    %v1163 = vadd.f32 %v1095, %v1162
    %v1164 = vpop.f32.mrb[0].mxu0
    %v1165 = vadd.f32 %v1095, %v1164
    %v1166 = vpop.f32.mrb[0].mxu0
    %v1167 = vadd.f32 %v1100, %v1166
    %v1168 = vpop.f32.mrb[0].mxu0
    %v1169 = vadd.f32 %v1100, %v1168
    %1170 = vmatprep.mubr.bf16.mxu0 0
    %1171 = vmatmul.mubr.bf16.gmra.mrb[0].mxu0 %v1126
    %v1172 = vpop.f32.mrb[0].mxu0
    %v1173 = vadd.f32 %v1105, %v1172
    %v1174 = vpop.f32.mrb[0].mxu0
    %v1175 = vadd.f32 %v1105, %v1174
    %v1176 = vpop.f32.mrb[0].mxu0
    %v1177 = vadd.f32 %v1110, %v1176
    %v1178 = vpop.f32.mrb[0].mxu0
    %v1179 = vadd.f32 %v1110, %v1178
    %1180 = vdwg.mxu0
    %1181 = vmatprep.subr.bf16.mxu0 %v1082
    %1182 = vmatpush1.bf16.msra.mxu0 %v1081
    %1183 = vmatprep.subr.bf16.mxu0 %v1086
    %1184 = vmatpush1.bf16.msra.mxu0 %v1085
    %1185 = vmatprep.subr.bf16.mxu0 0
    %1186 = vmatpush1.bf16.msra.mxu0 0
    %1187 = vmatprep.subr.bf16.mxu0 0
    %1188 = vmatpush1.bf16.msra.mxu0 0
    %1189 = vmatprep.subr.bf16.mxu0 0
    %1190 = vmatpush1.bf16.msra.mxu0 0
    %1191 = vmatprep.subr.bf16.mxu0 0
    %1192 = vmatpush1.bf16.msra.mxu0 0
    %1193 = vmatprep.subr.bf16.mxu0 0
    %1194 = vmatpush1.bf16.msra.mxu0 0
    %1195 = vmatprep.subr.bf16.mxu0 0
    %1196 = vmatpush1.bf16.msra.mxu0 0
    %1197 = vmatprep.subr.bf16.mxu0 0
    %1198 = vmatpush1.bf16.msra.mxu0 0
    %1199 = vmatprep.subr.bf16.mxu0 0
    %1200 = vmatpush1.bf16.msra.mxu0 0
    %1201 = vmatprep.subr.bf16.mxu0 0
    %1202 = vmatpush1.bf16.msra.mxu0 0
    %1203 = vmatprep.subr.bf16.mxu0 0
    %1204 = vmatpush1.bf16.msra.mxu0 0
    %1205 = vmatprep.subr.bf16.mxu0 0
    %1206 = vmatpush1.bf16.msra.mxu0 0
    %1207 = vmatprep.subr.bf16.mxu0 0
    %1208 = vmatpush1.bf16.msra.mxu0 0
    %1209 = vmatprep.subr.bf16.mxu0 0
    %1210 = vmatpush1.bf16.msra.mxu0 0
    %1211 = vmatprep.subr.bf16.mxu0 0
    %1212 = vmatpush1.bf16.msra.mxu0 0
    %1213 = vmatprep.mubr.bf16.mxu0 0
    %1214 = vmatmul.mubr.bf16.gmra.mrb[0].mxu0 %v1123
    %v1215 = vpop.f32.mrb[0].mxu0
    %v1216 = vadd.f32 %v1095, %v1215
    %v1217 = vpop.f32.mrb[0].mxu0
    %v1218 = vadd.f32 %v1095, %v1217
    %v1219 = vpop.f32.mrb[0].mxu0
    %v1220 = vadd.f32 %v1100, %v1219
    %v1221 = vpop.f32.mrb[0].mxu0
    %v1222 = vadd.f32 %v1100, %v1221
    %1223 = vmatprep.mubr.bf16.mxu0 0
    %1224 = vmatmul.mubr.bf16.gmra.mrb[0].mxu0 %v1126
    %v1225 = vpop.f32.mrb[0].mxu0
    %v1226 = vadd.f32 %v1105, %v1225
    %v1227 = vpop.f32.mrb[0].mxu0
    %v1228 = vadd.f32 %v1105, %v1227
    %v1229 = vpop.f32.mrb[0].mxu0
    %v1230 = vadd.f32 %v1110, %v1229
    %v1231 = vpop.f32.mrb[0].mxu0
    %v1232 = vadd.f32 %v1110, %v1231
    %1233 = vdwg.mxu0
    %v1234 = vtanh.pop %v1163
    %v1235 = vtanh.pop %v1165
    %v1236 = vtanh.pop %v1216
    %v1237 = vtanh.pop %v1218
    %v1238 = vtanh.pop %v1167
    %v1239 = vtanh.pop %v1169
    %v1240 = vtanh.pop %v1220
    %v1241 = vtanh.pop %v1222
    %v1242 = vtanh.pop %v1173
    %v1243 = vtanh.pop %v1175
    %v1244 = vtanh.pop %v1226
    %v1245 = vtanh.pop %v1228
    %v1246 = vtanh.pop %v1177
    %v1247 = vtanh.pop %v1179
    %v1248 = vtanh.pop %v1230
    %v1249 = vtanh.pop %v1232
    %v1250 = vadd.f32 %v1234, %v882
    %v1251 = vadd.f32 %v1235, %v883
    %v1252 = vadd.f32 %v1236, %v884
    %v1253 = vadd.f32 %v1237, %v885
    %v1254 = vadd.f32 %v1238, %v886
    %v1255 = vadd.f32 %v1239, %v887
    %v1256 = vadd.f32 %v1240, %v888
    %v1257 = vadd.f32 %v1241, %v889
    %v1258 = vadd.f32 %v1242, %v890
    %v1259 = vadd.f32 %v1243, %v891
    %v1260 = vadd.f32 %v1244, %v892
    %v1261 = vadd.f32 %v1245, %v893
    %v1262 = vadd.f32 %v1246, %v894
    %v1263 = vadd.f32 %v1247, %v895
    %v1264 = vadd.f32 %v1248, %v896
    %v1265 = vadd.f32 %v1249, %v897
    %s1266 = scalar_lea.vmem %s3, 32
    %v1267 = vld [vmem:[%s1266] sm:$0xf]
    %v1268 = vld [vmem:[%s1266 + $0x4] sm:$0xf]
    %v1269 = vld [vmem:[%s1266 + $0x8] sm:$0xf]
    %v1270 = vld [vmem:[%s1266 + $0xc] sm:$0xf]
    %v1271 = vpack.c.bf16 %v1254, %v1250
    %v1272 = vpack.c.bf16 %v1255, %v1251
    %v1273 = vpack.c.bf16 %v1256, %v1252
    %v1274 = vpack.c.bf16 %v1257, %v1253
    %v1275 = vpack.c.bf16 %v1262, %v1258
    %v1276 = vpack.c.bf16 %v1263, %v1259
    %v1277 = vpack.c.bf16 %v1264, %v1260
    %v1278 = vpack.c.bf16 %v1265, %v1261
    %s1279 = scalar_lea.vmem %s4, 64
    %v1280 = vld [vmem:[%s1279] sm:$0xff]
    %v1281 = vld [vmem:[%s1279 + $0x8] sm:$0xff]
    %v1282 = vld [vmem:[%s1279 + $0x10] sm:$0xff]
    %v1283 = vld [vmem:[%s1279 + $0x18] sm:$0xff]
    %1285 = vset.pattern.permute.xlu0 0
    %1286 = vperm.xlu0 %1285, %v1280
    %v1287 = vpop.permute.xlu0 %1286
    %1290 = vset.pattern.permute.xlu0 0
    %1291 = vperm.xlu0 %1290, %v1281
    %v1292 = vpop.permute.xlu0 %1291
    %1295 = vset.pattern.permute.xlu0 0
    %1296 = vperm.xlu0 %1295, %v1282
    %v1297 = vpop.permute.xlu0 %1296
    %1300 = vset.pattern.permute.xlu0 0
    %1301 = vperm.xlu0 %1300, %v1283
    %v1302 = vpop.permute.xlu0 %1301
    %v1308 = vunpack.c.l.b16 %v1267
    %v1309 = vunpack.c.l.b16 %v1268
    %v1310 = vunpack.c.l.b16 %v1269
    %v1311 = vunpack.c.l.b16 %v1270
    %v1312 = vpack.c.b16 %v1309, %v1308
    %v1313 = vpack.c.b16 %v1311, %v1310
    %v1315 = vsel %vm579, %v1312, 0
    %v1318 = vsel %vm579, %v1313, 0
    %1320 = vmatprep.subr.bf16.mxu0 %v1272
    %1321 = vmatpush1.bf16.msra.mxu0 %v1271
    %1322 = vmatprep.subr.bf16.mxu0 %v1276
    %1323 = vmatpush1.bf16.msra.mxu0 %v1275
    %1324 = vmatprep.subr.bf16.mxu0 0
    %1325 = vmatpush1.bf16.msra.mxu0 0
    %1326 = vmatprep.subr.bf16.mxu0 0
    %1327 = vmatpush1.bf16.msra.mxu0 0
    %1328 = vmatprep.subr.bf16.mxu0 0
    %1329 = vmatpush1.bf16.msra.mxu0 0
    %1330 = vmatprep.subr.bf16.mxu0 0
    %1331 = vmatpush1.bf16.msra.mxu0 0
    %1332 = vmatprep.subr.bf16.mxu0 0
    %1333 = vmatpush1.bf16.msra.mxu0 0
    %1334 = vmatprep.subr.bf16.mxu0 0
    %1335 = vmatpush1.bf16.msra.mxu0 0
    %1336 = vmatprep.subr.bf16.mxu0 0
    %1337 = vmatpush1.bf16.msra.mxu0 0
    %1338 = vmatprep.subr.bf16.mxu0 0
    %1339 = vmatpush1.bf16.msra.mxu0 0
    %1340 = vmatprep.subr.bf16.mxu0 0
    %1341 = vmatpush1.bf16.msra.mxu0 0
    %1342 = vmatprep.subr.bf16.mxu0 0
    %1343 = vmatpush1.bf16.msra.mxu0 0
    %1344 = vmatprep.subr.bf16.mxu0 0
    %1345 = vmatpush1.bf16.msra.mxu0 0
    %1346 = vmatprep.subr.bf16.mxu0 0
    %1347 = vmatpush1.bf16.msra.mxu0 0
    %1348 = vmatprep.subr.bf16.mxu0 0
    %1349 = vmatpush1.bf16.msra.mxu0 0
    %1350 = vmatprep.subr.bf16.mxu0 0
    %1351 = vmatpush1.bf16.msra.mxu0 0
    %1352 = vmatprep.mubr.bf16.mxu0 0
    %1353 = vmatmul.mubr.bf16.gmra.mrb[0].mxu0 %v1315
    %v1354 = vpop.f32.mrb[0].mxu0
    %v1355 = vadd.f32 %v1287, %v1354
    %v1356 = vpop.f32.mrb[0].mxu0
    %v1357 = vadd.f32 %v1287, %v1356
    %v1358 = vpop.f32.mrb[0].mxu0
    %v1359 = vadd.f32 %v1292, %v1358
    %v1360 = vpop.f32.mrb[0].mxu0
    %v1361 = vadd.f32 %v1292, %v1360
    %1362 = vmatprep.mubr.bf16.mxu0 0
    %1363 = vmatmul.mubr.bf16.gmra.mrb[0].mxu0 %v1318
    %v1364 = vpop.f32.mrb[0].mxu0
    %v1365 = vadd.f32 %v1297, %v1364
    %v1366 = vpop.f32.mrb[0].mxu0
    %v1367 = vadd.f32 %v1297, %v1366
    %v1368 = vpop.f32.mrb[0].mxu0
    %v1369 = vadd.f32 %v1302, %v1368
    %v1370 = vpop.f32.mrb[0].mxu0
    %v1371 = vadd.f32 %v1302, %v1370
    %1372 = vdwg.mxu0
    %1373 = vmatprep.subr.bf16.mxu0 %v1274
    %1374 = vmatpush1.bf16.msra.mxu0 %v1273
    %1375 = vmatprep.subr.bf16.mxu0 %v1278
    %1376 = vmatpush1.bf16.msra.mxu0 %v1277
    %1377 = vmatprep.subr.bf16.mxu0 0
    %1378 = vmatpush1.bf16.msra.mxu0 0
    %1379 = vmatprep.subr.bf16.mxu0 0
    %1380 = vmatpush1.bf16.msra.mxu0 0
    %1381 = vmatprep.subr.bf16.mxu0 0
    %1382 = vmatpush1.bf16.msra.mxu0 0
    %1383 = vmatprep.subr.bf16.mxu0 0
    %1384 = vmatpush1.bf16.msra.mxu0 0
    %1385 = vmatprep.subr.bf16.mxu0 0
    %1386 = vmatpush1.bf16.msra.mxu0 0
    %1387 = vmatprep.subr.bf16.mxu0 0
    %1388 = vmatpush1.bf16.msra.mxu0 0
    %1389 = vmatprep.subr.bf16.mxu0 0
    %1390 = vmatpush1.bf16.msra.mxu0 0
    %1391 = vmatprep.subr.bf16.mxu0 0
    %1392 = vmatpush1.bf16.msra.mxu0 0
    %1393 = vmatprep.subr.bf16.mxu0 0
    %1394 = vmatpush1.bf16.msra.mxu0 0
    %1395 = vmatprep.subr.bf16.mxu0 0
    %1396 = vmatpush1.bf16.msra.mxu0 0
    %1397 = vmatprep.subr.bf16.mxu0 0
    %1398 = vmatpush1.bf16.msra.mxu0 0
    %1399 = vmatprep.subr.bf16.mxu0 0
    %1400 = vmatpush1.bf16.msra.mxu0 0
    %1401 = vmatprep.subr.bf16.mxu0 0
    %1402 = vmatpush1.bf16.msra.mxu0 0
    %1403 = vmatprep.subr.bf16.mxu0 0
    %1404 = vmatpush1.bf16.msra.mxu0 0
    %1405 = vmatprep.mubr.bf16.mxu0 0
    %1406 = vmatmul.mubr.bf16.gmra.mrb[0].mxu0 %v1315
    %v1407 = vpop.f32.mrb[0].mxu0
    %v1408 = vadd.f32 %v1287, %v1407
    %v1409 = vpop.f32.mrb[0].mxu0
    %v1410 = vadd.f32 %v1287, %v1409
    %v1411 = vpop.f32.mrb[0].mxu0
    %v1412 = vadd.f32 %v1292, %v1411
    %v1413 = vpop.f32.mrb[0].mxu0
    %v1414 = vadd.f32 %v1292, %v1413
    %1415 = vmatprep.mubr.bf16.mxu0 0
    %1416 = vmatmul.mubr.bf16.gmra.mrb[0].mxu0 %v1318
    %v1417 = vpop.f32.mrb[0].mxu0
    %v1418 = vadd.f32 %v1297, %v1417
    %v1419 = vpop.f32.mrb[0].mxu0
    %v1420 = vadd.f32 %v1297, %v1419
    %v1421 = vpop.f32.mrb[0].mxu0
    %v1422 = vadd.f32 %v1302, %v1421
    %v1423 = vpop.f32.mrb[0].mxu0
    %v1424 = vadd.f32 %v1302, %v1423
    %1425 = vdwg.mxu0
    %v1426 = vtanh.pop %v1355
    %v1427 = vtanh.pop %v1357
    %v1428 = vtanh.pop %v1408
    %v1429 = vtanh.pop %v1410
    %v1430 = vtanh.pop %v1359
    %v1431 = vtanh.pop %v1361
    %v1432 = vtanh.pop %v1412
    %v1433 = vtanh.pop %v1414
    %v1434 = vtanh.pop %v1365
    %v1435 = vtanh.pop %v1367
    %v1436 = vtanh.pop %v1418
    %v1437 = vtanh.pop %v1420
    %v1438 = vtanh.pop %v1369
    %v1439 = vtanh.pop %v1371
    %v1440 = vtanh.pop %v1422
    %v1441 = vtanh.pop %v1424
    %s1442 = scalar_lea.vmem %s5, 32
    %v1443 = vld [vmem:[%s1442] sm:$0xf]
    %v1444 = vld [vmem:[%s1442 + $0x4] sm:$0xf]
    %v1445 = vld [vmem:[%s1442 + $0x8] sm:$0xf]
    %v1446 = vld [vmem:[%s1442 + $0xc] sm:$0xf]
    %v1447 = vpack.c.bf16 %v1430, %v1426
    %v1448 = vpack.c.bf16 %v1431, %v1427
    %v1449 = vpack.c.bf16 %v1432, %v1428
    %v1450 = vpack.c.bf16 %v1433, %v1429
    %v1451 = vpack.c.bf16 %v1438, %v1434
    %v1452 = vpack.c.bf16 %v1439, %v1435
    %v1453 = vpack.c.bf16 %v1440, %v1436
    %v1454 = vpack.c.bf16 %v1441, %v1437
    %s1455 = scalar_lea.vmem %s6, 64
    %v1456 = vld [vmem:[%s1455] sm:$0xff]
    %v1457 = vld [vmem:[%s1455 + $0x8] sm:$0xff]
    %v1458 = vld [vmem:[%s1455 + $0x10] sm:$0xff]
    %v1459 = vld [vmem:[%s1455 + $0x18] sm:$0xff]
    %1461 = vset.pattern.permute.xlu0 0
    %1462 = vperm.xlu0 %1461, %v1456
    %v1463 = vpop.permute.xlu0 %1462
    %1466 = vset.pattern.permute.xlu0 0
    %1467 = vperm.xlu0 %1466, %v1457
    %v1468 = vpop.permute.xlu0 %1467
    %1471 = vset.pattern.permute.xlu0 0
    %1472 = vperm.xlu0 %1471, %v1458
    %v1473 = vpop.permute.xlu0 %1472
    %1476 = vset.pattern.permute.xlu0 0
    %1477 = vperm.xlu0 %1476, %v1459
    %v1478 = vpop.permute.xlu0 %1477
    %v1484 = vunpack.c.l.b16 %v1443
    %v1485 = vunpack.c.l.b16 %v1444
    %v1486 = vunpack.c.l.b16 %v1445
    %v1487 = vunpack.c.l.b16 %v1446
    %v1488 = vpack.c.b16 %v1485, %v1484
    %v1489 = vpack.c.b16 %v1487, %v1486
    %v1491 = vsel %vm579, %v1488, 0
    %v1494 = vsel %vm579, %v1489, 0
    %1496 = vmatprep.subr.bf16.mxu0 %v1448
    %1497 = vmatpush1.bf16.msra.mxu0 %v1447
    %1498 = vmatprep.subr.bf16.mxu0 %v1452
    %1499 = vmatpush1.bf16.msra.mxu0 %v1451
    %1500 = vmatprep.subr.bf16.mxu0 0
    %1501 = vmatpush1.bf16.msra.mxu0 0
    %1502 = vmatprep.subr.bf16.mxu0 0
    %1503 = vmatpush1.bf16.msra.mxu0 0
    %1504 = vmatprep.subr.bf16.mxu0 0
    %1505 = vmatpush1.bf16.msra.mxu0 0
    %1506 = vmatprep.subr.bf16.mxu0 0
    %1507 = vmatpush1.bf16.msra.mxu0 0
    %1508 = vmatprep.subr.bf16.mxu0 0
    %1509 = vmatpush1.bf16.msra.mxu0 0
    %1510 = vmatprep.subr.bf16.mxu0 0
    %1511 = vmatpush1.bf16.msra.mxu0 0
    %1512 = vmatprep.subr.bf16.mxu0 0
    %1513 = vmatpush1.bf16.msra.mxu0 0
    %1514 = vmatprep.subr.bf16.mxu0 0
    %1515 = vmatpush1.bf16.msra.mxu0 0
    %1516 = vmatprep.subr.bf16.mxu0 0
    %1517 = vmatpush1.bf16.msra.mxu0 0
    %1518 = vmatprep.subr.bf16.mxu0 0
    %1519 = vmatpush1.bf16.msra.mxu0 0
    %1520 = vmatprep.subr.bf16.mxu0 0
    %1521 = vmatpush1.bf16.msra.mxu0 0
    %1522 = vmatprep.subr.bf16.mxu0 0
    %1523 = vmatpush1.bf16.msra.mxu0 0
    %1524 = vmatprep.subr.bf16.mxu0 0
    %1525 = vmatpush1.bf16.msra.mxu0 0
    %1526 = vmatprep.subr.bf16.mxu0 0
    %1527 = vmatpush1.bf16.msra.mxu0 0
    %1528 = vmatprep.mubr.bf16.mxu0 0
    %1529 = vmatmul.mubr.bf16.gmra.mrb[0].mxu0 %v1491
    %v1530 = vpop.f32.mrb[0].mxu0
    %v1531 = vadd.f32 %v1463, %v1530
    %v1532 = vpop.f32.mrb[0].mxu0
    %v1533 = vadd.f32 %v1463, %v1532
    %v1534 = vpop.f32.mrb[0].mxu0
    %v1535 = vadd.f32 %v1468, %v1534
    %v1536 = vpop.f32.mrb[0].mxu0
    %v1537 = vadd.f32 %v1468, %v1536
    %1538 = vmatprep.mubr.bf16.mxu0 0
    %1539 = vmatmul.mubr.bf16.gmra.mrb[0].mxu0 %v1494
    %v1540 = vpop.f32.mrb[0].mxu0
    %v1541 = vadd.f32 %v1473, %v1540
    %v1542 = vpop.f32.mrb[0].mxu0
    %v1543 = vadd.f32 %v1473, %v1542
    %v1544 = vpop.f32.mrb[0].mxu0
    %v1545 = vadd.f32 %v1478, %v1544
    %v1546 = vpop.f32.mrb[0].mxu0
    %v1547 = vadd.f32 %v1478, %v1546
    %1548 = vdwg.mxu0
    %1549 = vmatprep.subr.bf16.mxu0 %v1450
    %1550 = vmatpush1.bf16.msra.mxu0 %v1449
    %1551 = vmatprep.subr.bf16.mxu0 %v1454
    %1552 = vmatpush1.bf16.msra.mxu0 %v1453
    %1553 = vmatprep.subr.bf16.mxu0 0
    %1554 = vmatpush1.bf16.msra.mxu0 0
    %1555 = vmatprep.subr.bf16.mxu0 0
    %1556 = vmatpush1.bf16.msra.mxu0 0
    %1557 = vmatprep.subr.bf16.mxu0 0
    %1558 = vmatpush1.bf16.msra.mxu0 0
    %1559 = vmatprep.subr.bf16.mxu0 0
    %1560 = vmatpush1.bf16.msra.mxu0 0
    %1561 = vmatprep.subr.bf16.mxu0 0
    %1562 = vmatpush1.bf16.msra.mxu0 0
    %1563 = vmatprep.subr.bf16.mxu0 0
    %1564 = vmatpush1.bf16.msra.mxu0 0
    %1565 = vmatprep.subr.bf16.mxu0 0
    %1566 = vmatpush1.bf16.msra.mxu0 0
    %1567 = vmatprep.subr.bf16.mxu0 0
    %1568 = vmatpush1.bf16.msra.mxu0 0
    %1569 = vmatprep.subr.bf16.mxu0 0
    %1570 = vmatpush1.bf16.msra.mxu0 0
    %1571 = vmatprep.subr.bf16.mxu0 0
    %1572 = vmatpush1.bf16.msra.mxu0 0
    %1573 = vmatprep.subr.bf16.mxu0 0
    %1574 = vmatpush1.bf16.msra.mxu0 0
    %1575 = vmatprep.subr.bf16.mxu0 0
    %1576 = vmatpush1.bf16.msra.mxu0 0
    %1577 = vmatprep.subr.bf16.mxu0 0
    %1578 = vmatpush1.bf16.msra.mxu0 0
    %1579 = vmatprep.subr.bf16.mxu0 0
    %1580 = vmatpush1.bf16.msra.mxu0 0
    %1581 = vmatprep.mubr.bf16.mxu0 0
    %1582 = vmatmul.mubr.bf16.gmra.mrb[0].mxu0 %v1491
    %v1583 = vpop.f32.mrb[0].mxu0
    %v1584 = vadd.f32 %v1463, %v1583
    %v1585 = vpop.f32.mrb[0].mxu0
    %v1586 = vadd.f32 %v1463, %v1585
    %v1587 = vpop.f32.mrb[0].mxu0
    %v1588 = vadd.f32 %v1468, %v1587
    %v1589 = vpop.f32.mrb[0].mxu0
    %v1590 = vadd.f32 %v1468, %v1589
    %1591 = vmatprep.mubr.bf16.mxu0 0
    %1592 = vmatmul.mubr.bf16.gmra.mrb[0].mxu0 %v1494
    %v1593 = vpop.f32.mrb[0].mxu0
    %v1594 = vadd.f32 %v1473, %v1593
    %v1595 = vpop.f32.mrb[0].mxu0
    %v1596 = vadd.f32 %v1473, %v1595
    %v1597 = vpop.f32.mrb[0].mxu0
    %v1598 = vadd.f32 %v1478, %v1597
    %v1599 = vpop.f32.mrb[0].mxu0
    %v1600 = vadd.f32 %v1478, %v1599
    %1601 = vdwg.mxu0
    %v1602 = vtanh.pop %v1531
    %v1603 = vtanh.pop %v1533
    %v1604 = vtanh.pop %v1584
    %v1605 = vtanh.pop %v1586
    %v1606 = vtanh.pop %v1535
    %v1607 = vtanh.pop %v1537
    %v1608 = vtanh.pop %v1588
    %v1609 = vtanh.pop %v1590
    %v1610 = vtanh.pop %v1541
    %v1611 = vtanh.pop %v1543
    %v1612 = vtanh.pop %v1594
    %v1613 = vtanh.pop %v1596
    %v1614 = vtanh.pop %v1545
    %v1615 = vtanh.pop %v1547
    %v1616 = vtanh.pop %v1598
    %v1617 = vtanh.pop %v1600
    %v1618 = vadd.f32 %v1602, %v1250
    %v1619 = vadd.f32 %v1603, %v1251
    %v1620 = vadd.f32 %v1604, %v1252
    %v1621 = vadd.f32 %v1605, %v1253
    %v1622 = vadd.f32 %v1606, %v1254
    %v1623 = vadd.f32 %v1607, %v1255
    %v1624 = vadd.f32 %v1608, %v1256
    %v1625 = vadd.f32 %v1609, %v1257
    %v1626 = vadd.f32 %v1610, %v1258
    %v1627 = vadd.f32 %v1611, %v1259
    %v1628 = vadd.f32 %v1612, %v1260
    %v1629 = vadd.f32 %v1613, %v1261
    %v1630 = vadd.f32 %v1614, %v1262
    %v1631 = vadd.f32 %v1615, %v1263
    %v1632 = vadd.f32 %v1616, %v1264
    %v1633 = vadd.f32 %v1617, %v1265
    %v1634 = vld [vmem:[%s7] sm:$0x1]
    %v1635 = vld [vmem:[#allocation2] sm:$0x1]
    %1637 = vset.pattern.permute.xlu0 0
    %1638 = vperm.xlu0 %1637, %v1635
    %v1639 = vpop.permute.xlu0 %1638
    %v1641 = vlaneseq
    %v1642 = vshrl.u32 %v1641, 7
    %v1643 = vsub.s32 0, %v1642
    %v1644 = vrot.slane %v1639, %v1643
    %v1646 = vsel %vm579, %v1634, 0
    %1648 = vmatprep.subr.mxu0 %v1619
    %1649 = vmatpush1.msra.mxu0 %v1618
    %1650 = vmatprep.subr.mxu0 %v1623
    %1651 = vmatpush1.msra.mxu0 %v1622
    %1652 = vmatprep.subr.mxu0 %v1627
    %1653 = vmatpush1.msra.mxu0 %v1626
    %1654 = vmatprep.subr.mxu0 %v1631
    %1655 = vmatpush1.msra.mxu0 %v1630
    %1656 = vmatprep.subr.mxu0 0.0
    %1657 = vmatpush1.msra.mxu0 0.0
    %1658 = vmatprep.subr.mxu0 0.0
    %1659 = vmatpush1.msra.mxu0 0.0
    %1660 = vmatprep.subr.mxu0 0.0
    %1661 = vmatpush1.msra.mxu0 0.0
    %1662 = vmatprep.subr.mxu0 0.0
    %1663 = vmatpush1.msra.mxu0 0.0
    %1664 = vmatprep.subr.mxu0 0.0
    %1665 = vmatpush1.msra.mxu0 0.0
    %1666 = vmatprep.subr.mxu0 0.0
    %1667 = vmatpush1.msra.mxu0 0.0
    %1668 = vmatprep.subr.mxu0 0.0
    %1669 = vmatpush1.msra.mxu0 0.0
    %1670 = vmatprep.subr.mxu0 0.0
    %1671 = vmatpush1.msra.mxu0 0.0
    %1672 = vmatprep.subr.mxu0 0.0
    %1673 = vmatpush1.msra.mxu0 0.0
    %1674 = vmatprep.subr.mxu0 0.0
    %1675 = vmatpush1.msra.mxu0 0.0
    %1676 = vmatprep.subr.mxu0 0.0
    %1677 = vmatpush1.msra.mxu0 0.0
    %1678 = vmatprep.subr.mxu0 0.0
    %1679 = vmatpush1.msra.mxu0 0.0
    %1680 = vmatprep.subr.mxu0 0.0
    %1681 = vmatpush1.msra.mxu0 0.0
    %1682 = vmatprep.subr.mxu0 0.0
    %1683 = vmatpush1.msra.mxu0 0.0
    %1684 = vmatprep.subr.mxu0 0.0
    %1685 = vmatpush1.msra.mxu0 0.0
    %1686 = vmatprep.subr.mxu0 0.0
    %1687 = vmatpush1.msra.mxu0 0.0
    %1688 = vmatprep.subr.mxu0 0.0
    %1689 = vmatpush1.msra.mxu0 0.0
    %1690 = vmatprep.subr.mxu0 0.0
    %1691 = vmatpush1.msra.mxu0 0.0
    %1692 = vmatprep.subr.mxu0 0.0
    %1693 = vmatpush1.msra.mxu0 0.0
    %1694 = vmatprep.subr.mxu0 0.0
    %1695 = vmatpush1.msra.mxu0 0.0
    %1696 = vmatprep.subr.mxu0 0.0
    %1697 = vmatpush1.msra.mxu0 0.0
    %1698 = vmatprep.subr.mxu0 0.0
    %1699 = vmatpush1.msra.mxu0 0.0
    %1700 = vmatprep.subr.mxu0 0.0
    %1701 = vmatpush1.msra.mxu0 0.0
    %1702 = vmatprep.subr.mxu0 0.0
    %1703 = vmatpush1.msra.mxu0 0.0
    %1704 = vmatprep.subr.mxu0 0.0
    %1705 = vmatpush1.msra.mxu0 0.0
    %1706 = vmatprep.subr.mxu0 0.0
    %1707 = vmatpush1.msra.mxu0 0.0
    %1708 = vmatprep.subr.mxu0 0.0
    %1709 = vmatpush1.msra.mxu0 0.0
    %1710 = vmatprep.subr.mxu0 0.0
    %1711 = vmatpush1.msra.mxu0 0.0
    %1712 = vmatprep.mubr.f32.mxu0 0.0
    %1713 = vmatmul.mubr.f32.gmra.mrb[0].mxu0 %v1646
    %v1714 = vpop.f32.mrb[0].mxu0
    %v1715 = vadd.f32 %v1644, %v1714
    %v1716 = vpop.f32.mrb[0].mxu0
    %v1717 = vadd.f32 %v1644, %v1716
    %1718 = vdwg.mxu0
    %1719 = vmatprep.subr.mxu0 %v1621
    %1720 = vmatpush1.msra.mxu0 %v1620
    %1721 = vmatprep.subr.mxu0 %v1625
    %1722 = vmatpush1.msra.mxu0 %v1624
    %1723 = vmatprep.subr.mxu0 %v1629
    %1724 = vmatpush1.msra.mxu0 %v1628
    %1725 = vmatprep.subr.mxu0 %v1633
    %1726 = vmatpush1.msra.mxu0 %v1632
    %1727 = vmatprep.subr.mxu0 0.0
    %1728 = vmatpush1.msra.mxu0 0.0
    %1729 = vmatprep.subr.mxu0 0.0
    %1730 = vmatpush1.msra.mxu0 0.0
    %1731 = vmatprep.subr.mxu0 0.0
    %1732 = vmatpush1.msra.mxu0 0.0
    %1733 = vmatprep.subr.mxu0 0.0
    %1734 = vmatpush1.msra.mxu0 0.0
    %1735 = vmatprep.subr.mxu0 0.0
    %1736 = vmatpush1.msra.mxu0 0.0
    %1737 = vmatprep.subr.mxu0 0.0
    %1738 = vmatpush1.msra.mxu0 0.0
    %1739 = vmatprep.subr.mxu0 0.0
    %1740 = vmatpush1.msra.mxu0 0.0
    %1741 = vmatprep.subr.mxu0 0.0
    %1742 = vmatpush1.msra.mxu0 0.0
    %1743 = vmatprep.subr.mxu0 0.0
    %1744 = vmatpush1.msra.mxu0 0.0
    %1745 = vmatprep.subr.mxu0 0.0
    %1746 = vmatpush1.msra.mxu0 0.0
    %1747 = vmatprep.subr.mxu0 0.0
    %1748 = vmatpush1.msra.mxu0 0.0
    %1749 = vmatprep.subr.mxu0 0.0
    %1750 = vmatpush1.msra.mxu0 0.0
    %1751 = vmatprep.subr.mxu0 0.0
    %1752 = vmatpush1.msra.mxu0 0.0
    %1753 = vmatprep.subr.mxu0 0.0
    %1754 = vmatpush1.msra.mxu0 0.0
    %1755 = vmatprep.subr.mxu0 0.0
    %1756 = vmatpush1.msra.mxu0 0.0
    %1757 = vmatprep.subr.mxu0 0.0
    %1758 = vmatpush1.msra.mxu0 0.0
    %1759 = vmatprep.subr.mxu0 0.0
    %1760 = vmatpush1.msra.mxu0 0.0
    %1761 = vmatprep.subr.mxu0 0.0
    %1762 = vmatpush1.msra.mxu0 0.0
    %1763 = vmatprep.subr.mxu0 0.0
    %1764 = vmatpush1.msra.mxu0 0.0
    %1765 = vmatprep.subr.mxu0 0.0
    %1766 = vmatpush1.msra.mxu0 0.0
    %1767 = vmatprep.subr.mxu0 0.0
    %1768 = vmatpush1.msra.mxu0 0.0
    %1769 = vmatprep.subr.mxu0 0.0
    %1770 = vmatpush1.msra.mxu0 0.0
    %1771 = vmatprep.subr.mxu0 0.0
    %1772 = vmatpush1.msra.mxu0 0.0
    %1773 = vmatprep.subr.mxu0 0.0
    %1774 = vmatpush1.msra.mxu0 0.0
    %1775 = vmatprep.subr.mxu0 0.0
    %1776 = vmatpush1.msra.mxu0 0.0
    %1777 = vmatprep.subr.mxu0 0.0
    %1778 = vmatpush1.msra.mxu0 0.0
    %1779 = vmatprep.subr.mxu0 0.0
    %1780 = vmatpush1.msra.mxu0 0.0
    %1781 = vmatprep.subr.mxu0 0.0
    %1782 = vmatpush1.msra.mxu0 0.0
    %1783 = vmatprep.mubr.f32.mxu0 0.0
    %1784 = vmatmul.mubr.f32.gmra.mrb[0].mxu0 %v1646
    %v1785 = vpop.f32.mrb[0].mxu0
    %v1786 = vadd.f32 %v1644, %v1785
    %v1787 = vpop.f32.mrb[0].mxu0
    %v1788 = vadd.f32 %v1644, %v1787
    %1789 = vdwg.mxu0
    %v1794 = vrot.slane %v434, 1
    %v1795 = vrot.slane %v436, 1
    %v1796 = vrot.slane %v529, 1
    %v1797 = vrot.slane %v531, 1
    %v1802 = vmul.f32 %v434, %v1794
    %v1803 = vmul.f32 %v436, %v1795
    %v1804 = vmul.f32 %v529, %v1796
    %v1805 = vmul.f32 %v531, %v1797
    %v1806 = vrot.slane %v434, 2
    %v1807 = vrot.slane %v436, 2
    %v1808 = vrot.slane %v529, 2
    %v1809 = vrot.slane %v531, 2
    %v1814 = vmul.f32 %v1802, %v1806
    %v1815 = vmul.f32 %v1803, %v1807
    %v1816 = vmul.f32 %v1804, %v1808
    %v1817 = vmul.f32 %v1805, %v1809
    %v1818 = vrot.slane %v434, 3
    %v1819 = vrot.slane %v436, 3
    %v1820 = vrot.slane %v529, 3
    %v1821 = vrot.slane %v531, 3
    %v1826 = vmul.f32 %v1814, %v1818
    %v1827 = vmul.f32 %v1815, %v1819
    %v1828 = vmul.f32 %v1816, %v1820
    %v1829 = vmul.f32 %v1817, %v1821
    %v1830 = vsub.f32 1.0, %v434
    %v1831 = vsub.f32 1.0, %v436
    %v1832 = vsub.f32 1.0, %v529
    %v1833 = vsub.f32 1.0, %v531
    %v1834 = vmul.f32 %v1826, %v1830
    %v1835 = vmul.f32 %v1827, %v1831
    %v1836 = vmul.f32 %v1828, %v1832
    %v1837 = vmul.f32 %v1829, %v1833
    %v1842 = vrot.slane %v1830, 1
    %v1843 = vrot.slane %v1831, 1
    %v1844 = vrot.slane %v1832, 1
    %v1845 = vrot.slane %v1833, 1
    %v1850 = vmul.f32 %v1834, %v1842
    %v1851 = vmul.f32 %v1835, %v1843
    %v1852 = vmul.f32 %v1836, %v1844
    %v1853 = vmul.f32 %v1837, %v1845
    %v1854 = vrot.slane %v1830, 2
    %v1855 = vrot.slane %v1831, 2
    %v1856 = vrot.slane %v1832, 2
    %v1857 = vrot.slane %v1833, 2
    %v1862 = vmul.f32 %v1850, %v1854
    %v1863 = vmul.f32 %v1851, %v1855
    %v1864 = vmul.f32 %v1852, %v1856
    %v1865 = vmul.f32 %v1853, %v1857
    %v1866 = vmul.f32 %v1715, %v1862
    %v1867 = vmul.f32 %v1717, %v1863
    %v1868 = vmul.f32 %v1786, %v1864
    %v1869 = vmul.f32 %v1788, %v1865
    %v1870 = vadd.f32 %v1866, 1.0
    %v1871 = vadd.f32 %v1867, 1.0
    %v1872 = vadd.f32 %v1868, 1.0
    %v1873 = vadd.f32 %v1869, 1.0
    %v1878 = vcombine.low %v1870, %v1871
    %v1879 = vcombine.low %v1872, %v1873
    %v1881 = vunpack.c.l.s4 1966171168
    %v1882 = vunpack.c.0.s8 %v1881
    %v1883 = vlaneseq
    %v1884 = vshrl.u32 %v1883, 7
    %v1885 = vsub.s32 %v1882, %v1884
    %v1886 = vrot.slane %v1878, %v1885
    %v1888 = vunpack.c.l.s4 1966171168
    %v1889 = vunpack.c.0.s8 %v1888
    %v1890 = vlaneseq
    %v1891 = vshrl.u32 %v1890, 7
    %v1892 = vsub.s32 %v1889, %v1891
    %v1893 = vrot.slane %v1879, %v1892
    %v1894 = vcombine.low %v1886, %v1893
    %v1896 = vunpack.c.l.s4 1966171168
    %v1897 = vunpack.c.0.s8 %v1896
    %v1898 = vlaneseq
    %v1899 = vshrl.u32 %v1898, 7
    %v1900 = vsub.s32 %v1897, %v1899
    %v1901 = vrot.slane %v1894, %v1900
    %v1903 = vlaneseq
    %vm1904 = vcmp.ge.s32.totalorder %v1903, 0
    %vm1905 = vcmp.lt.s32.totalorder %v1903, 512
    %vm1906 = vmand %vm1904, %vm1905
    %1907 = vst.msk [vmem:[#allocation3] sm:$0xf] %vm1906, %v1901
    // Predicated region
    $region38: #{drrnnt_forward.1} parent=1 // pred_check
      _
    $region39: #{drrnnt_forward.1} parent=1 // pred_check_branch
      %1909 = sbr.rel (0) target = $region41
    $region40: #{drrnnt_forward.1} parent=1 // pred_region
      %s1911 = ssub.s32 64, 64
      %1912 = vsyncadd [#allocation4], %s1911
      %s1914 = sshll.u32 [#allocation3], 4
      %s1915 = int_to_ptr.vmem [resolvable:$true] %s1914
      %1917 = dma.vmem_to_hbm [thread:$0]  %s1915, 64, %s9, [#allocation4]
    $region41: #{drrnnt_forward.1} parent=1 // pred_fallthru
      _
    // Predicated region
    $region42: #{drrnnt_forward.1} parent=1 // pred_check
      _
    $region43: #{drrnnt_forward.1} parent=1 // pred_check_branch
      %1919 = sbr.rel (0) target = $region45
    $region44: #{drrnnt_forward.1} parent=1 // pred_region
      %1920 = dma.done [#allocation4], 64
    $region45: #{drrnnt_forward.1} parent=1 // pred_fallthru
      _
    %1921 = vsyncpa [#allocation4], 1

</llo_original>
